<compile_context>
chip_gen: v7x
topology: tpu7x:2x2x1
jax: 0.10.0
libtpu: 0.0.40
codegen_flags: <defaults>
</compile_context>

<pallas_src>
import numpy as np
import jax
import jax.numpy as jnp
from jax.experimental import pallas as pl
from jax.experimental.pallas import tpu as pltpu

# ----------------------------- config -----------------------------------------
INPUT_DIM = 16
HIDDEN_DIM = 32
OUTPUT_DIM = 1          # fc output width (VPU-reduce path below assumes 1)
N_LAYERS = 1            # nn.GRU default
BS, SL = 2, 8

VMEM = pltpu.MemorySpace.VMEM


# ----------------------------- fused Pallas kernel ----------------------------
def make_gru_fc_kernel(num_layers, bs, sl, hidden):
    """Fused GRU (num_layers) + Linear(OUT=1) + ReLU kernel.

    Ref layout (all VMEM):
      x_ref        : (sl*bs, D_in)   rows ordered t*bs + b
      per layer l  : wih_t (D_l, 3H), whh_t (H, 3H), bih (1, 3H), bhh (1, 3H)
      wfc_ref      : (1, H)          Linear weight row (OUTPUT_DIM == 1)
      bfc_ref      : (1, 1)          Linear bias
      out_ref      : (bs, sl)        lane-dense output slab
    """
    H = hidden

    def kernel(*refs):
        x_ref = refs[0]
        layer_refs = refs[1:1 + 4 * num_layers]
        wfc_ref = refs[1 + 4 * num_layers]
        bfc_ref = refs[2 + 4 * num_layers]
        out_ref = refs[3 + 4 * num_layers]

        # Hoist all weight loads out of every loop (no per-iter reloads,
        # no per-iter broadcast_in_dim re-materialization).
        wfc = wfc_ref[...]                                   # (1, H)
        bfc = bfc_ref[...]                                   # (1, 1)

        seq = x_ref[...]                                     # (sl*bs, D_in)
        ys = []                                              # per-step (bs, 1) fc outputs
        for l in range(num_layers):
            wih_t = layer_refs[4 * l + 0][...]               # (D_l, 3H)
            whh_t = layer_refs[4 * l + 1][...]               # (H, 3H)
            bih = layer_refs[4 * l + 2][...]                 # (1, 3H)
            bhh = layer_refs[4 * l + 3][...]                 # (1, 3H)
            last = (l == num_layers - 1)

            # Hoisted input projection: ONE matmul for all (t, b) rows.
            xg = jnp.dot(seq, wih_t,
                         preferred_element_type=jnp.float32) + bih   # (sl*bs, 3H)

            h = jnp.zeros((bs, H), jnp.float32)              # batched hidden state
            hs = []
            for t in range(sl):                              # static unroll over time
                gi = xg[t * bs:(t + 1) * bs, :]              # (bs, 3H) static sublane slice
                gh = jnp.dot(h, whh_t,
                             preferred_element_type=jnp.float32) + bhh   # (bs, 3H)
                # PyTorch GRU gate order [r | z | n]: one sigmoid over 2H lanes.
                rz = jax.nn.sigmoid(gi[:, :2 * H] + gh[:, :2 * H])
                r = rz[:, :H]
                z = rz[:, H:]
                n = jnp.tanh(gi[:, 2 * H:] + r * gh[:, 2 * H:])
                h = n + z * (h - n)                          # == (1 - z) * n + z * h
                if last:
                    # fc(H -> 1) fused into the step: VPU mul + XLU lane reduce;
                    # hides under the next step's MXU latency.
                    ys.append(jnp.sum(h * wfc, axis=-1, keepdims=True) + bfc)
                else:
                    hs.append(h)
            if not last:
                # Next layer's input, already in t*bs+b row order (register
                # values only -- no VMEM round trip).
                seq = jnp.concatenate(hs, axis=0)            # (sl*bs, H)
                # TODO(synk): training-mode inter-layer dropout (identity here).

        out = jnp.concatenate(ys, axis=1)                    # (bs, sl)
        out_ref[...] = jnp.maximum(out, 0.0)                 # single lane-dense store

    return kernel


def gru_forward(x, d):
    """Single fused pallas_call for the whole forward pass."""
    bs, sl, d_in = x.shape
    assert OUTPUT_DIM == 1
    kernel = make_gru_fc_kernel(N_LAYERS, bs, sl, HIDDEN_DIM)

    # Layout plumbing in the wrapper: rows ordered t*bs + b so each timestep's
    # (bs, 3H) gate slice is a contiguous sublane pair inside the kernel.
    x_tb = jnp.transpose(x, (1, 0, 2)).reshape(sl * bs, d_in)

    flat_weights = []
    for layer in d["layers"]:
        flat_weights.extend(layer)

    n_inputs = 1 + 4 * N_LAYERS + 2                  # x, per-layer weights, fc_w, fc_b
    out2d = pl.pallas_call(
        kernel,
        out_shape=jax.ShapeDtypeStruct((bs, sl), jnp.float32),
        in_specs=[pl.BlockSpec(memory_space=VMEM)] * n_inputs,
        out_specs=pl.BlockSpec(memory_space=VMEM),
    )(x_tb, *flat_weights, d["fc_w"], d["fc_b"])
    return out2d[..., None]                          # (bs, sl, OUTPUT_DIM)


# ----------------------------- parameters -------------------------------------
def init_params(key):
    keys = iter(jax.random.split(key, 4 * N_LAYERS + 2))

    def u(shape, k):
        return jax.random.uniform(next(keys), shape, jnp.float32, -k, k)

    kh = 1.0 / np.sqrt(HIDDEN_DIM)
    layers = []
    d_in = INPUT_DIM
    for _ in range(N_LAYERS):
        wih = u((3 * HIDDEN_DIM, d_in), kh)          # torch layout (3H, D), [r|z|n]
        whh = u((3 * HIDDEN_DIM, HIDDEN_DIM), kh)
        bih = u((3 * HIDDEN_DIM,), kh)
        bhh = u((3 * HIDDEN_DIM,), kh)
        layers.append((wih, whh, bih, bhh))
        d_in = HIDDEN_DIM
    fc_w = u((OUTPUT_DIM, HIDDEN_DIM), kh)           # torch Linear layout (OUT, H)
    fc_b = u((OUTPUT_DIM,), kh)
    return {"layers": layers, "fc_w": fc_w, "fc_b": fc_b}


def prepare(p):
    """Kernel-side layouts: transposed gate matrices, 2-D biases, (1,1) fc bias."""
    layers = []
    for wih, whh, bih, bhh in p["layers"]:
        layers.append((wih.T, whh.T, bih[None, :], bhh[None, :]))
    return {
        "layers": layers,
        "fc_w": p["fc_w"],                           # (1, H) broadcast row
        "fc_b": p["fc_b"].reshape(1, 1).astype(jnp.float32),   # (1, 1) VMEM
    }


# ----------------------------- pure-JAX reference ------------------------------
def ref_forward(x, p):
    bs, _, _ = x.shape
    H = HIDDEN_DIM
    seq = x
    for wih, whh, bih, bhh in p["layers"]:
        def step(h, xt, wih=wih, whh=whh, bih=bih, bhh=bhh):
            gi = xt @ wih.T + bih
            gh = h @ whh.T + bhh
            r = jax.nn.sigmoid(gi[:, :H] + gh[:, :H])
            z = jax.nn.sigmoid(gi[:, H:2 * H] + gh[:, H:2 * H])
            n = jnp.tanh(gi[:, 2 * H:] + r * gh[:, 2 * H:])
            h_new = (1.0 - z) * n + z * h
            return h_new, h_new

        h0 = jnp.zeros((bs, H), jnp.float32)
        _, ys = jax.lax.scan(step, h0, jnp.transpose(seq, (1, 0, 2)))
        seq = jnp.transpose(ys, (1, 0, 2))
    out = jnp.maximum(seq @ p["fc_w"].T + p["fc_b"], 0.0)
    return out


# ----------------------------------- main --------------------------------------
if __name__ == "__main__":
    key = jax.random.PRNGKey(0)
    kx, kp = jax.random.split(key)
    x = jax.random.normal(kx, (BS, SL, INPUT_DIM), jnp.float32)

    params = init_params(kp)
    derived = prepare(params)

    out = gru_forward(x, derived)
    out = jax.block_until_ready(out)
    assert out.shape == (BS, SL, OUTPUT_DIM)

    ref = ref_forward(x, params)
    np.testing.assert_allclose(np.asarray(out), np.asarray(ref), rtol=2e-3, atol=2e-3)

    print("KERNEL_OK")
</pallas_src>

<mosaic_0001>
module attributes {stable_mosaic.version = 11 : i64} {
  func.func @kernel(%arg0: memref<16x16xf32, #tpu.memory_space<vmem>>, %arg1: memref<16x96xf32, #tpu.memory_space<vmem>>, %arg2: memref<32x96xf32, #tpu.memory_space<vmem>>, %arg3: memref<1x96xf32, #tpu.memory_space<vmem>>, %arg4: memref<1x96xf32, #tpu.memory_space<vmem>>, %arg5: memref<1x32xf32, #tpu.memory_space<vmem>>, %arg6: memref<1x1xf32, #tpu.memory_space<vmem>>, %arg7: memref<2x8xf32, #tpu.memory_space<vmem>>) attributes {dimension_semantics = [], scalar_prefetch = 0 : i64, scratch_operands = 0 : i64, tpu.core_type = #tpu.core_type<tc>} {
    %c0 = arith.constant 0 : index
    %c0_0 = arith.constant 0 : index
    %0 = vector.load %arg5[%c0, %c0_0] : memref<1x32xf32, #tpu.memory_space<vmem>>, vector<1x32xf32>
    %c0_1 = arith.constant 0 : index
    %c0_2 = arith.constant 0 : index
    %1 = vector.load %arg6[%c0_1, %c0_2] : memref<1x1xf32, #tpu.memory_space<vmem>>, vector<1x1xf32>
    %c0_3 = arith.constant 0 : index
    %c0_4 = arith.constant 0 : index
    %2 = vector.load %arg0[%c0_3, %c0_4] : memref<16x16xf32, #tpu.memory_space<vmem>>, vector<16x16xf32>
    %c0_5 = arith.constant 0 : index
    %c0_6 = arith.constant 0 : index
    %3 = vector.load %arg1[%c0_5, %c0_6] : memref<16x96xf32, #tpu.memory_space<vmem>>, vector<16x96xf32>
    %c0_7 = arith.constant 0 : index
    %c0_8 = arith.constant 0 : index
    %4 = vector.load %arg2[%c0_7, %c0_8] : memref<32x96xf32, #tpu.memory_space<vmem>>, vector<32x96xf32>
    %c0_9 = arith.constant 0 : index
    %c0_10 = arith.constant 0 : index
    %5 = vector.load %arg3[%c0_9, %c0_10] : memref<1x96xf32, #tpu.memory_space<vmem>>, vector<1x96xf32>
    %c0_11 = arith.constant 0 : index
    %c0_12 = arith.constant 0 : index
    %6 = vector.load %arg4[%c0_11, %c0_12] : memref<1x96xf32, #tpu.memory_space<vmem>>, vector<1x96xf32>
    %cst = arith.constant dense<0.000000e+00> : vector<16x96xf32>
    %7 = tpu.matmul %2, %3, %cst {dimension_numbers = #tpu.dot_dimension_numbers<[1], [0], [0], [1], [0, 0, 1, 1], [], []>} : vector<16x16xf32>, vector<16x96xf32>, vector<16x96xf32> -> vector<16x96xf32>
    %8 = vector.broadcast %5 : vector<1x96xf32> to vector<16x96xf32>
    %9 = arith.addf %7, %8 : vector<16x96xf32>
    %cst_13 = arith.constant 0.000000e+00 : f32
    %10 = vector.broadcast %cst_13 : f32 to vector<2x32xf32>
    %11 = vector.extract_strided_slice %9 {offsets = [0, 0], sizes = [2, 96], strides = [1, 1]} : vector<16x96xf32> to vector<2x96xf32>
    %cst_14 = arith.constant dense<0.000000e+00> : vector<2x96xf32>
    %12 = tpu.matmul %10, %4, %cst_14 {dimension_numbers = #tpu.dot_dimension_numbers<[1], [0], [0], [1], [0, 0, 1, 1], [], []>} : vector<2x32xf32>, vector<32x96xf32>, vector<2x96xf32> -> vector<2x96xf32>
    %13 = vector.broadcast %6 : vector<1x96xf32> to vector<2x96xf32>
    %14 = arith.addf %12, %13 : vector<2x96xf32>
    %15 = vector.extract_strided_slice %11 {offsets = [0, 0], sizes = [2, 64], strides = [1, 1]} : vector<2x96xf32> to vector<2x64xf32>
    %16 = vector.extract_strided_slice %14 {offsets = [0, 0], sizes = [2, 64], strides = [1, 1]} : vector<2x96xf32> to vector<2x64xf32>
    %17 = arith.addf %15, %16 : vector<2x64xf32>
    %18 = arith.negf %17 : vector<2x64xf32>
    %19 = math.exp %18 : vector<2x64xf32>
    %cst_15 = arith.constant 1.000000e+00 : f32
    %20 = vector.broadcast %cst_15 : f32 to vector<2x64xf32>
    %21 = arith.addf %20, %19 : vector<2x64xf32>
    %22 = arith.divf %20, %21 : vector<2x64xf32>
    %23 = vector.extract_strided_slice %22 {offsets = [0, 0], sizes = [2, 32], strides = [1, 1]} : vector<2x64xf32> to vector<2x32xf32>
    %24 = vector.extract_strided_slice %22 {offsets = [0, 32], sizes = [2, 32], strides = [1, 1]} : vector<2x64xf32> to vector<2x32xf32>
    %25 = vector.extract_strided_slice %11 {offsets = [0, 64], sizes = [2, 32], strides = [1, 1]} : vector<2x96xf32> to vector<2x32xf32>
    %26 = vector.extract_strided_slice %14 {offsets = [0, 64], sizes = [2, 32], strides = [1, 1]} : vector<2x96xf32> to vector<2x32xf32>
    %27 = arith.mulf %23, %26 : vector<2x32xf32>
    %28 = arith.addf %25, %27 : vector<2x32xf32>
    %29 = math.tanh %28 : vector<2x32xf32>
    %30 = arith.subf %10, %29 : vector<2x32xf32>
    %31 = arith.mulf %24, %30 : vector<2x32xf32>
    %32 = arith.addf %29, %31 : vector<2x32xf32>
    %33 = vector.broadcast %0 : vector<1x32xf32> to vector<2x32xf32>
    %34 = arith.mulf %32, %33 : vector<2x32xf32>
    %cst_16 = arith.constant dense<0.000000e+00> : vector<2xf32>
    %35 = vector.multi_reduction <add>, %34, %cst_16 [1] : vector<2x32xf32> to vector<2xf32>
    %36 = vector.shape_cast %35 : vector<2xf32> to vector<2x1xf32>
    %37 = vector.broadcast %1 : vector<1x1xf32> to vector<2x1xf32>
    %38 = arith.addf %36, %37 : vector<2x1xf32>
    %39 = vector.extract_strided_slice %9 {offsets = [2, 0], sizes = [2, 96], strides = [1, 1]} : vector<16x96xf32> to vector<2x96xf32>
    %cst_17 = arith.constant dense<0.000000e+00> : vector<2x96xf32>
    %40 = tpu.matmul %32, %4, %cst_17 {dimension_numbers = #tpu.dot_dimension_numbers<[1], [0], [0], [1], [0, 0, 1, 1], [], []>} : vector<2x32xf32>, vector<32x96xf32>, vector<2x96xf32> -> vector<2x96xf32>
    %41 = vector.broadcast %6 : vector<1x96xf32> to vector<2x96xf32>
    %42 = arith.addf %40, %41 : vector<2x96xf32>
    %43 = vector.extract_strided_slice %39 {offsets = [0, 0], sizes = [2, 64], strides = [1, 1]} : vector<2x96xf32> to vector<2x64xf32>
    %44 = vector.extract_strided_slice %42 {offsets = [0, 0], sizes = [2, 64], strides = [1, 1]} : vector<2x96xf32> to vector<2x64xf32>
    %45 = arith.addf %43, %44 : vector<2x64xf32>
    %46 = arith.negf %45 : vector<2x64xf32>
    %47 = math.exp %46 : vector<2x64xf32>
    %cst_18 = arith.constant 1.000000e+00 : f32
    %48 = vector.broadcast %cst_18 : f32 to vector<2x64xf32>
    %49 = arith.addf %48, %47 : vector<2x64xf32>
    %50 = arith.divf %48, %49 : vector<2x64xf32>
    %51 = vector.extract_strided_slice %50 {offsets = [0, 0], sizes = [2, 32], strides = [1, 1]} : vector<2x64xf32> to vector<2x32xf32>
    %52 = vector.extract_strided_slice %50 {offsets = [0, 32], sizes = [2, 32], strides = [1, 1]} : vector<2x64xf32> to vector<2x32xf32>
    %53 = vector.extract_strided_slice %39 {offsets = [0, 64], sizes = [2, 32], strides = [1, 1]} : vector<2x96xf32> to vector<2x32xf32>
    %54 = vector.extract_strided_slice %42 {offsets = [0, 64], sizes = [2, 32], strides = [1, 1]} : vector<2x96xf32> to vector<2x32xf32>
    %55 = arith.mulf %51, %54 : vector<2x32xf32>
    %56 = arith.addf %53, %55 : vector<2x32xf32>
    %57 = math.tanh %56 : vector<2x32xf32>
    %58 = arith.subf %32, %57 : vector<2x32xf32>
    %59 = arith.mulf %52, %58 : vector<2x32xf32>
    %60 = arith.addf %57, %59 : vector<2x32xf32>
    %61 = vector.broadcast %0 : vector<1x32xf32> to vector<2x32xf32>
    %62 = arith.mulf %60, %61 : vector<2x32xf32>
    %cst_19 = arith.constant dense<0.000000e+00> : vector<2xf32>
    %63 = vector.multi_reduction <add>, %62, %cst_19 [1] : vector<2x32xf32> to vector<2xf32>
    %64 = vector.shape_cast %63 : vector<2xf32> to vector<2x1xf32>
    %65 = vector.broadcast %1 : vector<1x1xf32> to vector<2x1xf32>
    %66 = arith.addf %64, %65 : vector<2x1xf32>
    %67 = vector.extract_strided_slice %9 {offsets = [4, 0], sizes = [2, 96], strides = [1, 1]} : vector<16x96xf32> to vector<2x96xf32>
    %cst_20 = arith.constant dense<0.000000e+00> : vector<2x96xf32>
    %68 = tpu.matmul %60, %4, %cst_20 {dimension_numbers = #tpu.dot_dimension_numbers<[1], [0], [0], [1], [0, 0, 1, 1], [], []>} : vector<2x32xf32>, vector<32x96xf32>, vector<2x96xf32> -> vector<2x96xf32>
    %69 = vector.broadcast %6 : vector<1x96xf32> to vector<2x96xf32>
    %70 = arith.addf %68, %69 : vector<2x96xf32>
    %71 = vector.extract_strided_slice %67 {offsets = [0, 0], sizes = [2, 64], strides = [1, 1]} : vector<2x96xf32> to vector<2x64xf32>
    %72 = vector.extract_strided_slice %70 {offsets = [0, 0], sizes = [2, 64], strides = [1, 1]} : vector<2x96xf32> to vector<2x64xf32>
    %73 = arith.addf %71, %72 : vector<2x64xf32>
    %74 = arith.negf %73 : vector<2x64xf32>
    %75 = math.exp %74 : vector<2x64xf32>
    %cst_21 = arith.constant 1.000000e+00 : f32
    %76 = vector.broadcast %cst_21 : f32 to vector<2x64xf32>
    %77 = arith.addf %76, %75 : vector<2x64xf32>
    %78 = arith.divf %76, %77 : vector<2x64xf32>
    %79 = vector.extract_strided_slice %78 {offsets = [0, 0], sizes = [2, 32], strides = [1, 1]} : vector<2x64xf32> to vector<2x32xf32>
    %80 = vector.extract_strided_slice %78 {offsets = [0, 32], sizes = [2, 32], strides = [1, 1]} : vector<2x64xf32> to vector<2x32xf32>
    %81 = vector.extract_strided_slice %67 {offsets = [0, 64], sizes = [2, 32], strides = [1, 1]} : vector<2x96xf32> to vector<2x32xf32>
    %82 = vector.extract_strided_slice %70 {offsets = [0, 64], sizes = [2, 32], strides = [1, 1]} : vector<2x96xf32> to vector<2x32xf32>
    %83 = arith.mulf %79, %82 : vector<2x32xf32>
    %84 = arith.addf %81, %83 : vector<2x32xf32>
    %85 = math.tanh %84 : vector<2x32xf32>
    %86 = arith.subf %60, %85 : vector<2x32xf32>
    %87 = arith.mulf %80, %86 : vector<2x32xf32>
    %88 = arith.addf %85, %87 : vector<2x32xf32>
    %89 = vector.broadcast %0 : vector<1x32xf32> to vector<2x32xf32>
    %90 = arith.mulf %88, %89 : vector<2x32xf32>
    %cst_22 = arith.constant dense<0.000000e+00> : vector<2xf32>
    %91 = vector.multi_reduction <add>, %90, %cst_22 [1] : vector<2x32xf32> to vector<2xf32>
    %92 = vector.shape_cast %91 : vector<2xf32> to vector<2x1xf32>
    %93 = vector.broadcast %1 : vector<1x1xf32> to vector<2x1xf32>
    %94 = arith.addf %92, %93 : vector<2x1xf32>
    %95 = vector.extract_strided_slice %9 {offsets = [6, 0], sizes = [2, 96], strides = [1, 1]} : vector<16x96xf32> to vector<2x96xf32>
    %cst_23 = arith.constant dense<0.000000e+00> : vector<2x96xf32>
    %96 = tpu.matmul %88, %4, %cst_23 {dimension_numbers = #tpu.dot_dimension_numbers<[1], [0], [0], [1], [0, 0, 1, 1], [], []>} : vector<2x32xf32>, vector<32x96xf32>, vector<2x96xf32> -> vector<2x96xf32>
    %97 = vector.broadcast %6 : vector<1x96xf32> to vector<2x96xf32>
    %98 = arith.addf %96, %97 : vector<2x96xf32>
    %99 = vector.extract_strided_slice %95 {offsets = [0, 0], sizes = [2, 64], strides = [1, 1]} : vector<2x96xf32> to vector<2x64xf32>
    %100 = vector.extract_strided_slice %98 {offsets = [0, 0], sizes = [2, 64], strides = [1, 1]} : vector<2x96xf32> to vector<2x64xf32>
    %101 = arith.addf %99, %100 : vector<2x64xf32>
    %102 = arith.negf %101 : vector<2x64xf32>
    %103 = math.exp %102 : vector<2x64xf32>
    %cst_24 = arith.constant 1.000000e+00 : f32
    %104 = vector.broadcast %cst_24 : f32 to vector<2x64xf32>
    %105 = arith.addf %104, %103 : vector<2x64xf32>
    %106 = arith.divf %104, %105 : vector<2x64xf32>
    %107 = vector.extract_strided_slice %106 {offsets = [0, 0], sizes = [2, 32], strides = [1, 1]} : vector<2x64xf32> to vector<2x32xf32>
    %108 = vector.extract_strided_slice %106 {offsets = [0, 32], sizes = [2, 32], strides = [1, 1]} : vector<2x64xf32> to vector<2x32xf32>
    %109 = vector.extract_strided_slice %95 {offsets = [0, 64], sizes = [2, 32], strides = [1, 1]} : vector<2x96xf32> to vector<2x32xf32>
    %110 = vector.extract_strided_slice %98 {offsets = [0, 64], sizes = [2, 32], strides = [1, 1]} : vector<2x96xf32> to vector<2x32xf32>
    %111 = arith.mulf %107, %110 : vector<2x32xf32>
    %112 = arith.addf %109, %111 : vector<2x32xf32>
    %113 = math.tanh %112 : vector<2x32xf32>
    %114 = arith.subf %88, %113 : vector<2x32xf32>
    %115 = arith.mulf %108, %114 : vector<2x32xf32>
    %116 = arith.addf %113, %115 : vector<2x32xf32>
    %117 = vector.broadcast %0 : vector<1x32xf32> to vector<2x32xf32>
    %118 = arith.mulf %116, %117 : vector<2x32xf32>
    %cst_25 = arith.constant dense<0.000000e+00> : vector<2xf32>
    %119 = vector.multi_reduction <add>, %118, %cst_25 [1] : vector<2x32xf32> to vector<2xf32>
    %120 = vector.shape_cast %119 : vector<2xf32> to vector<2x1xf32>
    %121 = vector.broadcast %1 : vector<1x1xf32> to vector<2x1xf32>
    %122 = arith.addf %120, %121 : vector<2x1xf32>
    %123 = vector.extract_strided_slice %9 {offsets = [8, 0], sizes = [2, 96], strides = [1, 1]} : vector<16x96xf32> to vector<2x96xf32>
    %cst_26 = arith.constant dense<0.000000e+00> : vector<2x96xf32>
    %124 = tpu.matmul %116, %4, %cst_26 {dimension_numbers = #tpu.dot_dimension_numbers<[1], [0], [0], [1], [0, 0, 1, 1], [], []>} : vector<2x32xf32>, vector<32x96xf32>, vector<2x96xf32> -> vector<2x96xf32>
    %125 = vector.broadcast %6 : vector<1x96xf32> to vector<2x96xf32>
    %126 = arith.addf %124, %125 : vector<2x96xf32>
    %127 = vector.extract_strided_slice %123 {offsets = [0, 0], sizes = [2, 64], strides = [1, 1]} : vector<2x96xf32> to vector<2x64xf32>
    %128 = vector.extract_strided_slice %126 {offsets = [0, 0], sizes = [2, 64], strides = [1, 1]} : vector<2x96xf32> to vector<2x64xf32>
    %129 = arith.addf %127, %128 : vector<2x64xf32>
    %130 = arith.negf %129 : vector<2x64xf32>
    %131 = math.exp %130 : vector<2x64xf32>
    %cst_27 = arith.constant 1.000000e+00 : f32
    %132 = vector.broadcast %cst_27 : f32 to vector<2x64xf32>
    %133 = arith.addf %132, %131 : vector<2x64xf32>
    %134 = arith.divf %132, %133 : vector<2x64xf32>
    %135 = vector.extract_strided_slice %134 {offsets = [0, 0], sizes = [2, 32], strides = [1, 1]} : vector<2x64xf32> to vector<2x32xf32>
    %136 = vector.extract_strided_slice %134 {offsets = [0, 32], sizes = [2, 32], strides = [1, 1]} : vector<2x64xf32> to vector<2x32xf32>
    %137 = vector.extract_strided_slice %123 {offsets = [0, 64], sizes = [2, 32], strides = [1, 1]} : vector<2x96xf32> to vector<2x32xf32>
    %138 = vector.extract_strided_slice %126 {offsets = [0, 64], sizes = [2, 32], strides = [1, 1]} : vector<2x96xf32> to vector<2x32xf32>
    %139 = arith.mulf %135, %138 : vector<2x32xf32>
    %140 = arith.addf %137, %139 : vector<2x32xf32>
    %141 = math.tanh %140 : vector<2x32xf32>
    %142 = arith.subf %116, %141 : vector<2x32xf32>
    %143 = arith.mulf %136, %142 : vector<2x32xf32>
    %144 = arith.addf %141, %143 : vector<2x32xf32>
    %145 = vector.broadcast %0 : vector<1x32xf32> to vector<2x32xf32>
    %146 = arith.mulf %144, %145 : vector<2x32xf32>
    %cst_28 = arith.constant dense<0.000000e+00> : vector<2xf32>
    %147 = vector.multi_reduction <add>, %146, %cst_28 [1] : vector<2x32xf32> to vector<2xf32>
    %148 = vector.shape_cast %147 : vector<2xf32> to vector<2x1xf32>
    %149 = vector.broadcast %1 : vector<1x1xf32> to vector<2x1xf32>
    %150 = arith.addf %148, %149 : vector<2x1xf32>
    %151 = vector.extract_strided_slice %9 {offsets = [10, 0], sizes = [2, 96], strides = [1, 1]} : vector<16x96xf32> to vector<2x96xf32>
    %cst_29 = arith.constant dense<0.000000e+00> : vector<2x96xf32>
    %152 = tpu.matmul %144, %4, %cst_29 {dimension_numbers = #tpu.dot_dimension_numbers<[1], [0], [0], [1], [0, 0, 1, 1], [], []>} : vector<2x32xf32>, vector<32x96xf32>, vector<2x96xf32> -> vector<2x96xf32>
    %153 = vector.broadcast %6 : vector<1x96xf32> to vector<2x96xf32>
    %154 = arith.addf %152, %153 : vector<2x96xf32>
    %155 = vector.extract_strided_slice %151 {offsets = [0, 0], sizes = [2, 64], strides = [1, 1]} : vector<2x96xf32> to vector<2x64xf32>
    %156 = vector.extract_strided_slice %154 {offsets = [0, 0], sizes = [2, 64], strides = [1, 1]} : vector<2x96xf32> to vector<2x64xf32>
    %157 = arith.addf %155, %156 : vector<2x64xf32>
    %158 = arith.negf %157 : vector<2x64xf32>
    %159 = math.exp %158 : vector<2x64xf32>
    %cst_30 = arith.constant 1.000000e+00 : f32
    %160 = vector.broadcast %cst_30 : f32 to vector<2x64xf32>
    %161 = arith.addf %160, %159 : vector<2x64xf32>
    %162 = arith.divf %160, %161 : vector<2x64xf32>
    %163 = vector.extract_strided_slice %162 {offsets = [0, 0], sizes = [2, 32], strides = [1, 1]} : vector<2x64xf32> to vector<2x32xf32>
    %164 = vector.extract_strided_slice %162 {offsets = [0, 32], sizes = [2, 32], strides = [1, 1]} : vector<2x64xf32> to vector<2x32xf32>
    %165 = vector.extract_strided_slice %151 {offsets = [0, 64], sizes = [2, 32], strides = [1, 1]} : vector<2x96xf32> to vector<2x32xf32>
    %166 = vector.extract_strided_slice %154 {offsets = [0, 64], sizes = [2, 32], strides = [1, 1]} : vector<2x96xf32> to vector<2x32xf32>
    %167 = arith.mulf %163, %166 : vector<2x32xf32>
    %168 = arith.addf %165, %167 : vector<2x32xf32>
    %169 = math.tanh %168 : vector<2x32xf32>
    %170 = arith.subf %144, %169 : vector<2x32xf32>
    %171 = arith.mulf %164, %170 : vector<2x32xf32>
    %172 = arith.addf %169, %171 : vector<2x32xf32>
    %173 = vector.broadcast %0 : vector<1x32xf32> to vector<2x32xf32>
    %174 = arith.mulf %172, %173 : vector<2x32xf32>
    %cst_31 = arith.constant dense<0.000000e+00> : vector<2xf32>
    %175 = vector.multi_reduction <add>, %174, %cst_31 [1] : vector<2x32xf32> to vector<2xf32>
    %176 = vector.shape_cast %175 : vector<2xf32> to vector<2x1xf32>
    %177 = vector.broadcast %1 : vector<1x1xf32> to vector<2x1xf32>
    %178 = arith.addf %176, %177 : vector<2x1xf32>
    %179 = vector.extract_strided_slice %9 {offsets = [12, 0], sizes = [2, 96], strides = [1, 1]} : vector<16x96xf32> to vector<2x96xf32>
    %cst_32 = arith.constant dense<0.000000e+00> : vector<2x96xf32>
    %180 = tpu.matmul %172, %4, %cst_32 {dimension_numbers = #tpu.dot_dimension_numbers<[1], [0], [0], [1], [0, 0, 1, 1], [], []>} : vector<2x32xf32>, vector<32x96xf32>, vector<2x96xf32> -> vector<2x96xf32>
    %181 = vector.broadcast %6 : vector<1x96xf32> to vector<2x96xf32>
    %182 = arith.addf %180, %181 : vector<2x96xf32>
    %183 = vector.extract_strided_slice %179 {offsets = [0, 0], sizes = [2, 64], strides = [1, 1]} : vector<2x96xf32> to vector<2x64xf32>
    %184 = vector.extract_strided_slice %182 {offsets = [0, 0], sizes = [2, 64], strides = [1, 1]} : vector<2x96xf32> to vector<2x64xf32>
    %185 = arith.addf %183, %184 : vector<2x64xf32>
    %186 = arith.negf %185 : vector<2x64xf32>
    %187 = math.exp %186 : vector<2x64xf32>
    %cst_33 = arith.constant 1.000000e+00 : f32
    %188 = vector.broadcast %cst_33 : f32 to vector<2x64xf32>
    %189 = arith.addf %188, %187 : vector<2x64xf32>
    %190 = arith.divf %188, %189 : vector<2x64xf32>
    %191 = vector.extract_strided_slice %190 {offsets = [0, 0], sizes = [2, 32], strides = [1, 1]} : vector<2x64xf32> to vector<2x32xf32>
    %192 = vector.extract_strided_slice %190 {offsets = [0, 32], sizes = [2, 32], strides = [1, 1]} : vector<2x64xf32> to vector<2x32xf32>
    %193 = vector.extract_strided_slice %179 {offsets = [0, 64], sizes = [2, 32], strides = [1, 1]} : vector<2x96xf32> to vector<2x32xf32>
    %194 = vector.extract_strided_slice %182 {offsets = [0, 64], sizes = [2, 32], strides = [1, 1]} : vector<2x96xf32> to vector<2x32xf32>
    %195 = arith.mulf %191, %194 : vector<2x32xf32>
    %196 = arith.addf %193, %195 : vector<2x32xf32>
    %197 = math.tanh %196 : vector<2x32xf32>
    %198 = arith.subf %172, %197 : vector<2x32xf32>
    %199 = arith.mulf %192, %198 : vector<2x32xf32>
    %200 = arith.addf %197, %199 : vector<2x32xf32>
    %201 = vector.broadcast %0 : vector<1x32xf32> to vector<2x32xf32>
    %202 = arith.mulf %200, %201 : vector<2x32xf32>
    %cst_34 = arith.constant dense<0.000000e+00> : vector<2xf32>
    %203 = vector.multi_reduction <add>, %202, %cst_34 [1] : vector<2x32xf32> to vector<2xf32>
    %204 = vector.shape_cast %203 : vector<2xf32> to vector<2x1xf32>
    %205 = vector.broadcast %1 : vector<1x1xf32> to vector<2x1xf32>
    %206 = arith.addf %204, %205 : vector<2x1xf32>
    %207 = vector.extract_strided_slice %9 {offsets = [14, 0], sizes = [2, 96], strides = [1, 1]} : vector<16x96xf32> to vector<2x96xf32>
    %cst_35 = arith.constant dense<0.000000e+00> : vector<2x96xf32>
    %208 = tpu.matmul %200, %4, %cst_35 {dimension_numbers = #tpu.dot_dimension_numbers<[1], [0], [0], [1], [0, 0, 1, 1], [], []>} : vector<2x32xf32>, vector<32x96xf32>, vector<2x96xf32> -> vector<2x96xf32>
    %209 = vector.broadcast %6 : vector<1x96xf32> to vector<2x96xf32>
    %210 = arith.addf %208, %209 : vector<2x96xf32>
    %211 = vector.extract_strided_slice %207 {offsets = [0, 0], sizes = [2, 64], strides = [1, 1]} : vector<2x96xf32> to vector<2x64xf32>
    %212 = vector.extract_strided_slice %210 {offsets = [0, 0], sizes = [2, 64], strides = [1, 1]} : vector<2x96xf32> to vector<2x64xf32>
    %213 = arith.addf %211, %212 : vector<2x64xf32>
    %214 = arith.negf %213 : vector<2x64xf32>
    %215 = math.exp %214 : vector<2x64xf32>
    %cst_36 = arith.constant 1.000000e+00 : f32
    %216 = vector.broadcast %cst_36 : f32 to vector<2x64xf32>
    %217 = arith.addf %216, %215 : vector<2x64xf32>
    %218 = arith.divf %216, %217 : vector<2x64xf32>
    %219 = vector.extract_strided_slice %218 {offsets = [0, 0], sizes = [2, 32], strides = [1, 1]} : vector<2x64xf32> to vector<2x32xf32>
    %220 = vector.extract_strided_slice %218 {offsets = [0, 32], sizes = [2, 32], strides = [1, 1]} : vector<2x64xf32> to vector<2x32xf32>
    %221 = vector.extract_strided_slice %207 {offsets = [0, 64], sizes = [2, 32], strides = [1, 1]} : vector<2x96xf32> to vector<2x32xf32>
    %222 = vector.extract_strided_slice %210 {offsets = [0, 64], sizes = [2, 32], strides = [1, 1]} : vector<2x96xf32> to vector<2x32xf32>
    %223 = arith.mulf %219, %222 : vector<2x32xf32>
    %224 = arith.addf %221, %223 : vector<2x32xf32>
    %225 = math.tanh %224 : vector<2x32xf32>
    %226 = arith.subf %200, %225 : vector<2x32xf32>
    %227 = arith.mulf %220, %226 : vector<2x32xf32>
    %228 = arith.addf %225, %227 : vector<2x32xf32>
    %229 = vector.broadcast %0 : vector<1x32xf32> to vector<2x32xf32>
    %230 = arith.mulf %228, %229 : vector<2x32xf32>
    %cst_37 = arith.constant dense<0.000000e+00> : vector<2xf32>
    %231 = vector.multi_reduction <add>, %230, %cst_37 [1] : vector<2x32xf32> to vector<2xf32>
    %232 = vector.shape_cast %231 : vector<2xf32> to vector<2x1xf32>
    %233 = vector.broadcast %1 : vector<1x1xf32> to vector<2x1xf32>
    %234 = arith.addf %232, %233 : vector<2x1xf32>
    %235 = tpu.concatenate %38, %66, %94, %122, %150, %178, %206, %234 in 1 : vector<2x1xf32>, vector<2x1xf32>, vector<2x1xf32>, vector<2x1xf32>, vector<2x1xf32>, vector<2x1xf32>, vector<2x1xf32>, vector<2x1xf32> -> vector<2x8xf32>
    %cst_38 = arith.constant 0.000000e+00 : f32
    %236 = vector.broadcast %cst_38 : f32 to vector<2x8xf32>
    %237 = arith.maximumf %235, %236 : vector<2x8xf32>
    %c0_39 = arith.constant 0 : index
    %c0_40 = arith.constant 0 : index
    %238 = vector.load %arg7[%c0_39, %c0_40] : memref<2x8xf32, #tpu.memory_space<vmem>>, vector<2x8xf32>
    tpu.vector_store %arg7[%c0_39, %c0_40], %237 {strides = array<i32>} : memref<2x8xf32, #tpu.memory_space<vmem>>, vector<2x8xf32>,
    return
  }
}

</mosaic_0001>

<llo_original>
// kernel: tpu_custom_call.1
$region0: #{tpu_custom_call.1}
  #allocation0 [shape = 'u32[]', space=smem, size = 0x4, offset = 0x4, fixed_abs, tag = 'smem constant byte address 0x4 - core index']
  #allocation1 [shape = 'u32[144,128]{1,0:T(1,128)}', space=vmem, size = 0x12000, scoped, tag = 'internal scratch']
  #allocation2 [shape = 'f32[1,1]{1,0:T(1,128)S(1)}', space=vmem, size = 0x200, scoped, tag = 'scoped memory for tpu_custom_call.1']
  %s0 = inlined_call_operand.hbm [shape: f32[16,16], index: 0, kind: input, shape index: {}]
  %s1 = inlined_call_operand.hbm [shape: f32[16,96], index: 1, kind: input, shape index: {}]
  %s2 = inlined_call_operand.hbm [shape: f32[32,96], index: 2, kind: input, shape index: {}]
  %s3 = inlined_call_operand.vmem [shape: f32[1,96], index: 3, kind: input, shape index: {}]
  %s4 = inlined_call_operand.vmem [shape: f32[1,96], index: 4, kind: input, shape index: {}]
  %s5 = inlined_call_operand.vmem [shape: f32[1,32], index: 5, kind: input, shape index: {}]
  %s6 = inlined_call_operand.<no memory space> [shape: f32[1,1], index: 6, kind: input, shape index: {}]
  %s7 = inlined_call_operand.hbm [shape: f32[2,8], index: 7, kind: output, shape index: {}]
  %s8 = sld [smem:[#allocation0]]
  $region50: #{tpu_custom_call.1} parent=0
    _
  %s10 = ssub.s32 1, %s8
  %s11 = scalar_select 0, %s10, %s8
  %v12 = vstv %s6
  %13 = vst [vmem:[#allocation2] sm:$0x1] %v12
  $region1: #{tpu_custom_call.1} parent=0
    #allocation3 [shape = 'u8[8192]{0}', space=vmem, size = 0x2000, scoped, tag = 'input window, operand 0, single buffered']
    #allocation4 [shape = 's32[1]{0}', space=sflag, size = 0x4, scoped, tag = 'scoped memory for tpu_custom_call.1']
    #allocation5 [shape = 's32[1]{0}', space=sflag, size = 0x4, scoped, tag = 'scoped memory for tpu_custom_call.1']
    #allocation6 [shape = 'u8[8192]{0}', space=vmem, size = 0x2000, scoped, tag = 'input window, operand 1, single buffered']
    #allocation7 [shape = 's32[1]{0}', space=sflag, size = 0x4, scoped, tag = 'scoped memory for tpu_custom_call.1']
    #allocation8 [shape = 'u8[16384]{0}', space=vmem, size = 0x4000, scoped, tag = 'input window, operand 2, single buffered']
    #allocation9 [shape = 'u8[1024]{0}', space=vmem, size = 0x400, scoped, tag = 'output window, operand 0, single buffered']
    %14 = vsyncpa [#allocation4], 0
    %15 = vsyncpa [#allocation7], 0
    %16 = vsyncpa [#allocation5], 0
    // Predicated region
    $region2: #{tpu_custom_call.1} parent=1 // pred_check
      _
    $region3: #{tpu_custom_call.1} parent=1 // pred_check_branch
      %18 = sbr.rel (0) target = $region5
    $region4: #{tpu_custom_call.1} parent=1 // pred_region
      %s20 = ssub.s32 256, 256
      %21 = vsyncadd [#allocation4], %s20
      %s22 = sshll.u32 [#allocation3], 4
      %s23 = int_to_ptr.vmem [resolvable:$true] %s22
      %28 = dma.hbm_to_vmem [thread:$0]  %s0, 256, %s23, [#allocation4], 128, 128, 8
    $region5: #{tpu_custom_call.1} parent=1 // pred_fallthru
      _
    // Predicated region
    $region6: #{tpu_custom_call.1} parent=1 // pred_check
      _
    $region7: #{tpu_custom_call.1} parent=1 // pred_check_branch
      %30 = sbr.rel (0) target = $region9
    $region8: #{tpu_custom_call.1} parent=1 // pred_region
      %s32 = ssub.s32 256, 256
      %33 = vsyncadd [#allocation7], %s32
      %s34 = sshll.u32 [#allocation6], 4
      %s35 = int_to_ptr.vmem [resolvable:$true] %s34
      %40 = dma.hbm_to_vmem [thread:$0]  %s1, 256, %s35, [#allocation7], 128, 128, 8
    $region9: #{tpu_custom_call.1} parent=1 // pred_fallthru
      _
    // Predicated region
    $region10: #{tpu_custom_call.1} parent=1 // pred_check
      _
    $region11: #{tpu_custom_call.1} parent=1 // pred_check_branch
      %42 = sbr.rel (0) target = $region13
    $region12: #{tpu_custom_call.1} parent=1 // pred_region
      %s44 = ssub.s32 512, 512
      %45 = vsyncadd [#allocation7], %s44
      %s46 = sshll.u32 [#allocation8], 4
      %s47 = int_to_ptr.vmem [resolvable:$true] %s46
      %52 = dma.hbm_to_vmem [thread:$0]  %s2, 512, %s47, [#allocation7], 128, 128, 8
    $region13: #{tpu_custom_call.1} parent=1 // pred_fallthru
      _
    // Predicated region
    $region14: #{tpu_custom_call.1} parent=1 // pred_check
      _
    $region15: #{tpu_custom_call.1} parent=1 // pred_check_branch
      %54 = sbr.rel (0) target = $region17
    $region16: #{tpu_custom_call.1} parent=1 // pred_region
      _
    $region17: #{tpu_custom_call.1} parent=1 // pred_fallthru
      _
    // Predicated region
    $region18: #{tpu_custom_call.1} parent=1 // pred_check
      _
    $region19: #{tpu_custom_call.1} parent=1 // pred_check_branch
      %56 = sbr.rel (0) target = $region21
    $region20: #{tpu_custom_call.1} parent=1 // pred_region
      _
    $region21: #{tpu_custom_call.1} parent=1 // pred_fallthru
      _
    // Predicated region
    $region22: #{tpu_custom_call.1} parent=1 // pred_check
      _
    $region23: #{tpu_custom_call.1} parent=1 // pred_check_branch
      %58 = sbr.rel (0) target = $region25
    $region24: #{tpu_custom_call.1} parent=1 // pred_region
      _
    $region25: #{tpu_custom_call.1} parent=1 // pred_fallthru
      _
    // Predicated region
    $region26: #{tpu_custom_call.1} parent=1 // pred_check
      _
    $region27: #{tpu_custom_call.1} parent=1 // pred_check_branch
      %60 = sbr.rel (0) target = $region29
    $region28: #{tpu_custom_call.1} parent=1 // pred_region
      _
    $region29: #{tpu_custom_call.1} parent=1 // pred_fallthru
      _
    // Predicated region
    $region30: #{tpu_custom_call.1} parent=1 // pred_check
      _
    $region31: #{tpu_custom_call.1} parent=1 // pred_check_branch
      %62 = sbr.rel (0) target = $region33
    $region32: #{tpu_custom_call.1} parent=1 // pred_region
      %63 = dma.done [#allocation4], 256
    $region33: #{tpu_custom_call.1} parent=1 // pred_fallthru
      _
    // Predicated region
    $region34: #{tpu_custom_call.1} parent=1 // pred_check
      _
    $region35: #{tpu_custom_call.1} parent=1 // pred_check_branch
      %65 = sbr.rel (0) target = $region37
    $region36: #{tpu_custom_call.1} parent=1 // pred_region
      %66 = dma.done [#allocation7], 256
    $region37: #{tpu_custom_call.1} parent=1 // pred_fallthru
      _
    // Predicated region
    $region38: #{tpu_custom_call.1} parent=1 // pred_check
      _
    $region39: #{tpu_custom_call.1} parent=1 // pred_check_branch
      %68 = sbr.rel (0) target = $region41
    $region40: #{tpu_custom_call.1} parent=1 // pred_region
      %69 = dma.done [#allocation7], 512
    $region41: #{tpu_custom_call.1} parent=1 // pred_fallthru
      _
    %v70 = vld [vmem:[%s5] sm:$0x1]
    %v71 = vld [vmem:[#allocation2] sm:$0x1]
    %v72 = vld [vmem:[#allocation3] sm:$0xff]
    %v73 = vld [vmem:[#allocation3 + $0x8] sm:$0xff]
    %v74 = vld [vmem:[#allocation6] sm:$0xff]
    %v75 = vld [vmem:[#allocation6 + $0x8] sm:$0xff]
    %v76 = vld [vmem:[#allocation8] sm:$0xff]
    %v77 = vld [vmem:[#allocation8 + $0x8] sm:$0xff]
    %v78 = vld [vmem:[#allocation8 + $0x10] sm:$0xff]
    %v79 = vld [vmem:[#allocation8 + $0x18] sm:$0xff]
    %v80 = vld [vmem:[%s3] sm:$0x1]
    %v81 = vld [vmem:[%s4] sm:$0x1]
    %v83 = vlaneseq
    %v84 = vshrl.u32 %v83, 7
    %v85 = vsub.s32 0, %v84
    %v86 = vrot.slane %v80, %v85
    %vm88 = vcmask 130048
    %v90 = vsel %vm88, %v72, 0
    %v93 = vsel %vm88, %v73, 0
    %95 = vmatprep.subr.mxu0 0.0
    %96 = vmatpush1.msra.mxu0 %v74
    %97 = vmatprep.subr.mxu0 0.0
    %98 = vmatpush1.msra.mxu0 %v75
    %99 = vmatprep.subr.mxu0 0.0
    %100 = vmatpush1.msra.mxu0 0.0
    %101 = vmatprep.subr.mxu0 0.0
    %102 = vmatpush1.msra.mxu0 0.0
    %103 = vmatprep.subr.mxu0 0.0
    %104 = vmatpush1.msra.mxu0 0.0
    %105 = vmatprep.subr.mxu0 0.0
    %106 = vmatpush1.msra.mxu0 0.0
    %107 = vmatprep.subr.mxu0 0.0
    %108 = vmatpush1.msra.mxu0 0.0
    %109 = vmatprep.subr.mxu0 0.0
    %110 = vmatpush1.msra.mxu0 0.0
    %111 = vmatprep.subr.mxu0 0.0
    %112 = vmatpush1.msra.mxu0 0.0
    %113 = vmatprep.subr.mxu0 0.0
    %114 = vmatpush1.msra.mxu0 0.0
    %115 = vmatprep.subr.mxu0 0.0
    %116 = vmatpush1.msra.mxu0 0.0
    %117 = vmatprep.subr.mxu0 0.0
    %118 = vmatpush1.msra.mxu0 0.0
    %119 = vmatprep.subr.mxu0 0.0
    %120 = vmatpush1.msra.mxu0 0.0
    %121 = vmatprep.subr.mxu0 0.0
    %122 = vmatpush1.msra.mxu0 0.0
    %123 = vmatprep.subr.mxu0 0.0
    %124 = vmatpush1.msra.mxu0 0.0
    %125 = vmatprep.subr.mxu0 0.0
    %126 = vmatpush1.msra.mxu0 0.0
    %127 = vmatprep.subr.mxu0 0.0
    %128 = vmatpush1.msra.mxu0 0.0
    %129 = vmatprep.subr.mxu0 0.0
    %130 = vmatpush1.msra.mxu0 0.0
    %131 = vmatprep.subr.mxu0 0.0
    %132 = vmatpush1.msra.mxu0 0.0
    %133 = vmatprep.subr.mxu0 0.0
    %134 = vmatpush1.msra.mxu0 0.0
    %135 = vmatprep.subr.mxu0 0.0
    %136 = vmatpush1.msra.mxu0 0.0
    %137 = vmatprep.subr.mxu0 0.0
    %138 = vmatpush1.msra.mxu0 0.0
    %139 = vmatprep.subr.mxu0 0.0
    %140 = vmatpush1.msra.mxu0 0.0
    %141 = vmatprep.subr.mxu0 0.0
    %142 = vmatpush1.msra.mxu0 0.0
    %143 = vmatprep.subr.mxu0 0.0
    %144 = vmatpush1.msra.mxu0 0.0
    %145 = vmatprep.subr.mxu0 0.0
    %146 = vmatpush1.msra.mxu0 0.0
    %147 = vmatprep.subr.mxu0 0.0
    %148 = vmatpush1.msra.mxu0 0.0
    %149 = vmatprep.subr.mxu0 0.0
    %150 = vmatpush1.msra.mxu0 0.0
    %151 = vmatprep.subr.mxu0 0.0
    %152 = vmatpush1.msra.mxu0 0.0
    %153 = vmatprep.subr.mxu0 0.0
    %154 = vmatpush1.msra.mxu0 0.0
    %155 = vmatprep.subr.mxu0 0.0
    %156 = vmatpush1.msra.mxu0 0.0
    %157 = vmatprep.subr.mxu0 0.0
    %158 = vmatpush1.msra.mxu0 0.0
    %159 = vmatprep.mubr.f32.mxu0 0.0
    %160 = vmatmul.mubr.f32.gmra.mrb[0].mxu0 %v90
    %v161 = vpop.f32.mrb[0].mxu0
    %v162 = vadd.f32 %v86, %v161
    %v163 = vpop.f32.mrb[0].mxu0
    %164 = vmatprep.mubr.f32.mxu0 0.0
    %165 = vmatmul.mubr.f32.gmra.mrb[0].mxu0 %v93
    %v166 = vpop.f32.mrb[0].mxu0
    %v167 = vadd.f32 %v86, %v166
    %v168 = vpop.f32.mrb[0].mxu0
    %169 = vdwg.mxu0
    %v171 = vlaneseq
    %v172 = vshrl.u32 %v171, 7
    %v173 = vsub.s32 0, %v172
    %v174 = vrot.slane %v81, %v173
    %vm176 = vcmask 261120
    %v178 = vsel %vm176, 0.0, 0
    %180 = vmatprep.subr.mxu0 0.0
    %181 = vmatpush1.msra.mxu0 %v76
    %182 = vmatprep.subr.mxu0 0.0
    %183 = vmatpush1.msra.mxu0 %v77
    %184 = vmatprep.subr.mxu0 0.0
    %185 = vmatpush1.msra.mxu0 %v78
    %186 = vmatprep.subr.mxu0 0.0
    %187 = vmatpush1.msra.mxu0 %v79
    %188 = vmatprep.subr.mxu0 0.0
    %189 = vmatpush1.msra.mxu0 0.0
    %190 = vmatprep.subr.mxu0 0.0
    %191 = vmatpush1.msra.mxu0 0.0
    %192 = vmatprep.subr.mxu0 0.0
    %193 = vmatpush1.msra.mxu0 0.0
    %194 = vmatprep.subr.mxu0 0.0
    %195 = vmatpush1.msra.mxu0 0.0
    %196 = vmatprep.subr.mxu0 0.0
    %197 = vmatpush1.msra.mxu0 0.0
    %198 = vmatprep.subr.mxu0 0.0
    %199 = vmatpush1.msra.mxu0 0.0
    %200 = vmatprep.subr.mxu0 0.0
    %201 = vmatpush1.msra.mxu0 0.0
    %202 = vmatprep.subr.mxu0 0.0
    %203 = vmatpush1.msra.mxu0 0.0
    %204 = vmatprep.subr.mxu0 0.0
    %205 = vmatpush1.msra.mxu0 0.0
    %206 = vmatprep.subr.mxu0 0.0
    %207 = vmatpush1.msra.mxu0 0.0
    %208 = vmatprep.subr.mxu0 0.0
    %209 = vmatpush1.msra.mxu0 0.0
    %210 = vmatprep.subr.mxu0 0.0
    %211 = vmatpush1.msra.mxu0 0.0
    %212 = vmatprep.subr.mxu0 0.0
    %213 = vmatpush1.msra.mxu0 0.0
    %214 = vmatprep.subr.mxu0 0.0
    %215 = vmatpush1.msra.mxu0 0.0
    %216 = vmatprep.subr.mxu0 0.0
    %217 = vmatpush1.msra.mxu0 0.0
    %218 = vmatprep.subr.mxu0 0.0
    %219 = vmatpush1.msra.mxu0 0.0
    %220 = vmatprep.subr.mxu0 0.0
    %221 = vmatpush1.msra.mxu0 0.0
    %222 = vmatprep.subr.mxu0 0.0
    %223 = vmatpush1.msra.mxu0 0.0
    %224 = vmatprep.subr.mxu0 0.0
    %225 = vmatpush1.msra.mxu0 0.0
    %226 = vmatprep.subr.mxu0 0.0
    %227 = vmatpush1.msra.mxu0 0.0
    %228 = vmatprep.subr.mxu0 0.0
    %229 = vmatpush1.msra.mxu0 0.0
    %230 = vmatprep.subr.mxu0 0.0
    %231 = vmatpush1.msra.mxu0 0.0
    %232 = vmatprep.subr.mxu0 0.0
    %233 = vmatpush1.msra.mxu0 0.0
    %234 = vmatprep.subr.mxu0 0.0
    %235 = vmatpush1.msra.mxu0 0.0
    %236 = vmatprep.subr.mxu0 0.0
    %237 = vmatpush1.msra.mxu0 0.0
    %238 = vmatprep.subr.mxu0 0.0
    %239 = vmatpush1.msra.mxu0 0.0
    %240 = vmatprep.subr.mxu0 0.0
    %241 = vmatpush1.msra.mxu0 0.0
    %242 = vmatprep.subr.mxu0 0.0
    %243 = vmatpush1.msra.mxu0 0.0
    %244 = vmatprep.mubr.f32.mxu0 0.0
    %245 = vmatmul.mubr.f32.gmra.mrb[0].mxu0 %v178
    %v246 = vpop.f32.mrb[0].mxu0
    %v247 = vadd.f32 %v174, %v246
    %v248 = vpop.f32.mrb[0].mxu0
    %249 = vdwg.mxu0
    %v250 = vadd.f32 %v162, %v247
    %v251 = vxor.u32 %v250, 2147483648
    %v252 = vmul.f32 %v251, 1.442695
    %v253 = vpow.pop %v252
    %v254 = vadd.f32 %v253, 1.0
    %v255 = vrcp.pop %v254
    %v256 = vmul.f32 1.0, %v255
    %258 = vrot.lane.b32.xlu0 %v247, 64
    %v259 = vpop.permute.xlu0 %258
    %v261 = vmul.f32 %v256, %v259
    %263 = vrot.lane.b32.xlu0 %v261, 64
    %v264 = vpop.permute.xlu0 %263
    %v266 = vadd.f32 %v162, %v264
    %v267 = vtanh.pop %v266
    %v268 = vsub.f32 0.0, %v267
    %270 = vrot.lane.b32.xlu0 %v268, 96
    %v271 = vpop.permute.xlu0 %270
    %v273 = vmul.f32 %v256, %v271
    %275 = vrot.lane.b32.xlu0 %v273, 32
    %v276 = vpop.permute.xlu0 %275
    %v278 = vadd.f32 %v267, %v276
    %v280 = vlaneseq
    %v281 = vshrl.u32 %v280, 7
    %v282 = vsub.s32 0, %v281
    %v283 = vrot.slane %v70, %v282
    %284 = vrot.lane.b32.xlu0 %v283, 64
    %v285 = vpop.permute.xlu0 %284
    %v287 = vmul.f32 %v278, %v285
    %289 = vrot.lane.b32.xlu0 %v287, 64
    %v290 = vpop.permute.xlu0 %289
    %vm292 = vcmask 254976
    %v293 = vsel %vm292, %v290, 0.0
    %294 = vadd.xlane.f32.xlu0 %v293
    %v295 = vpop.xlane.xlu0 %294
    %v297 = vlaneseq
    %v298 = vshrl.u32 %v297, 7
    %v299 = vsub.s32 0, %v298
    %v300 = vrot.slane %v71, %v299
    %v302 = vadd.f32 %v295, %v300
    %304 = vrot.lane.b32.xlu0 %v278, 64
    %v305 = vpop.permute.xlu0 %304
    %v306 = vsel %vm176, %v305, 0
    %308 = vmatprep.subr.mxu0 0.0
    %309 = vmatpush1.msra.mxu0 %v76
    %310 = vmatprep.subr.mxu0 0.0
    %311 = vmatpush1.msra.mxu0 %v77
    %312 = vmatprep.subr.mxu0 0.0
    %313 = vmatpush1.msra.mxu0 %v78
    %314 = vmatprep.subr.mxu0 0.0
    %315 = vmatpush1.msra.mxu0 %v79
    %316 = vmatprep.subr.mxu0 0.0
    %317 = vmatpush1.msra.mxu0 0.0
    %318 = vmatprep.subr.mxu0 0.0
    %319 = vmatpush1.msra.mxu0 0.0
    %320 = vmatprep.subr.mxu0 0.0
    %321 = vmatpush1.msra.mxu0 0.0
    %322 = vmatprep.subr.mxu0 0.0
    %323 = vmatpush1.msra.mxu0 0.0
    %324 = vmatprep.subr.mxu0 0.0
    %325 = vmatpush1.msra.mxu0 0.0
    %326 = vmatprep.subr.mxu0 0.0
    %327 = vmatpush1.msra.mxu0 0.0
    %328 = vmatprep.subr.mxu0 0.0
    %329 = vmatpush1.msra.mxu0 0.0
    %330 = vmatprep.subr.mxu0 0.0
    %331 = vmatpush1.msra.mxu0 0.0
    %332 = vmatprep.subr.mxu0 0.0
    %333 = vmatpush1.msra.mxu0 0.0
    %334 = vmatprep.subr.mxu0 0.0
    %335 = vmatpush1.msra.mxu0 0.0
    %336 = vmatprep.subr.mxu0 0.0
    %337 = vmatpush1.msra.mxu0 0.0
    %338 = vmatprep.subr.mxu0 0.0
    %339 = vmatpush1.msra.mxu0 0.0
    %340 = vmatprep.subr.mxu0 0.0
    %341 = vmatpush1.msra.mxu0 0.0
    %342 = vmatprep.subr.mxu0 0.0
    %343 = vmatpush1.msra.mxu0 0.0
    %344 = vmatprep.subr.mxu0 0.0
    %345 = vmatpush1.msra.mxu0 0.0
    %346 = vmatprep.subr.mxu0 0.0
    %347 = vmatpush1.msra.mxu0 0.0
    %348 = vmatprep.subr.mxu0 0.0
    %349 = vmatpush1.msra.mxu0 0.0
    %350 = vmatprep.subr.mxu0 0.0
    %351 = vmatpush1.msra.mxu0 0.0
    %352 = vmatprep.subr.mxu0 0.0
    %353 = vmatpush1.msra.mxu0 0.0
    %354 = vmatprep.subr.mxu0 0.0
    %355 = vmatpush1.msra.mxu0 0.0
    %356 = vmatprep.subr.mxu0 0.0
    %357 = vmatpush1.msra.mxu0 0.0
    %358 = vmatprep.subr.mxu0 0.0
    %359 = vmatpush1.msra.mxu0 0.0
    %360 = vmatprep.subr.mxu0 0.0
    %361 = vmatpush1.msra.mxu0 0.0
    %362 = vmatprep.subr.mxu0 0.0
    %363 = vmatpush1.msra.mxu0 0.0
    %364 = vmatprep.subr.mxu0 0.0
    %365 = vmatpush1.msra.mxu0 0.0
    %366 = vmatprep.subr.mxu0 0.0
    %367 = vmatpush1.msra.mxu0 0.0
    %368 = vmatprep.subr.mxu0 0.0
    %369 = vmatpush1.msra.mxu0 0.0
    %370 = vmatprep.subr.mxu0 0.0
    %371 = vmatpush1.msra.mxu0 0.0
    %372 = vmatprep.mubr.f32.mxu0 0.0
    %373 = vmatmul.mubr.f32.gmra.mrb[0].mxu0 %v306
    %v374 = vpop.f32.mrb[0].mxu0
    %v375 = vadd.f32 %v174, %v374
    %v376 = vpop.f32.mrb[0].mxu0
    %377 = vdwg.mxu0
    %v379 = vrot.slane %v375, 6
    %v381 = vadd.f32 %v162, %v379
    %v382 = vxor.u32 %v381, 2147483648
    %v383 = vmul.f32 %v382, 1.442695
    %v384 = vpow.pop %v383
    %v385 = vadd.f32 %v384, 1.0
    %v386 = vrcp.pop %v385
    %v387 = vmul.f32 1.0, %v386
    %388 = vrot.lane.b32.xlu0 %v379, 64
    %v389 = vpop.permute.xlu0 %388
    %v391 = vmul.f32 %v387, %v389
    %393 = vrot.lane.b32.xlu0 %v391, 64
    %v394 = vpop.permute.xlu0 %393
    %v396 = vadd.f32 %v162, %v394
    %v397 = vtanh.pop %v396
    %v399 = vrot.slane %v397, 2
    %v401 = vsub.f32 %v278, %v399
    %v403 = vrot.slane %v401, 6
    %404 = vrot.lane.b32.xlu0 %v403, 96
    %v405 = vpop.permute.xlu0 %404
    %v407 = vmul.f32 %v387, %v405
    %409 = vrot.lane.b32.xlu0 %v407, 32
    %v410 = vpop.permute.xlu0 %409
    %v412 = vadd.f32 %v397, %v410
    %v413 = vmul.f32 %v412, %v285
    %415 = vrot.lane.b32.xlu0 %v413, 64
    %v416 = vpop.permute.xlu0 %415
    %vm418 = vcmask 257026
    %v419 = vsel %vm418, %v416, 0.0
    %420 = vadd.xlane.f32.xlu0 %v419
    %v421 = vpop.xlane.xlu0 %420
    %v422 = vadd.f32 %v421, %v300
    %v424 = vrot.slane %v412, 2
    %425 = vrot.lane.b32.xlu0 %v424, 64
    %v426 = vpop.permute.xlu0 %425
    %v427 = vsel %vm176, %v426, 0
    %429 = vmatprep.subr.mxu0 0.0
    %430 = vmatpush1.msra.mxu0 %v76
    %431 = vmatprep.subr.mxu0 0.0
    %432 = vmatpush1.msra.mxu0 %v77
    %433 = vmatprep.subr.mxu0 0.0
    %434 = vmatpush1.msra.mxu0 %v78
    %435 = vmatprep.subr.mxu0 0.0
    %436 = vmatpush1.msra.mxu0 %v79
    %437 = vmatprep.subr.mxu0 0.0
    %438 = vmatpush1.msra.mxu0 0.0
    %439 = vmatprep.subr.mxu0 0.0
    %440 = vmatpush1.msra.mxu0 0.0
    %441 = vmatprep.subr.mxu0 0.0
    %442 = vmatpush1.msra.mxu0 0.0
    %443 = vmatprep.subr.mxu0 0.0
    %444 = vmatpush1.msra.mxu0 0.0
    %445 = vmatprep.subr.mxu0 0.0
    %446 = vmatpush1.msra.mxu0 0.0
    %447 = vmatprep.subr.mxu0 0.0
    %448 = vmatpush1.msra.mxu0 0.0
    %449 = vmatprep.subr.mxu0 0.0
    %450 = vmatpush1.msra.mxu0 0.0
    %451 = vmatprep.subr.mxu0 0.0
    %452 = vmatpush1.msra.mxu0 0.0
    %453 = vmatprep.subr.mxu0 0.0
    %454 = vmatpush1.msra.mxu0 0.0
    %455 = vmatprep.subr.mxu0 0.0
    %456 = vmatpush1.msra.mxu0 0.0
    %457 = vmatprep.subr.mxu0 0.0
    %458 = vmatpush1.msra.mxu0 0.0
    %459 = vmatprep.subr.mxu0 0.0
    %460 = vmatpush1.msra.mxu0 0.0
    %461 = vmatprep.subr.mxu0 0.0
    %462 = vmatpush1.msra.mxu0 0.0
    %463 = vmatprep.subr.mxu0 0.0
    %464 = vmatpush1.msra.mxu0 0.0
    %465 = vmatprep.subr.mxu0 0.0
    %466 = vmatpush1.msra.mxu0 0.0
    %467 = vmatprep.subr.mxu0 0.0
    %468 = vmatpush1.msra.mxu0 0.0
    %469 = vmatprep.subr.mxu0 0.0
    %470 = vmatpush1.msra.mxu0 0.0
    %471 = vmatprep.subr.mxu0 0.0
    %472 = vmatpush1.msra.mxu0 0.0
    %473 = vmatprep.subr.mxu0 0.0
    %474 = vmatpush1.msra.mxu0 0.0
    %475 = vmatprep.subr.mxu0 0.0
    %476 = vmatpush1.msra.mxu0 0.0
    %477 = vmatprep.subr.mxu0 0.0
    %478 = vmatpush1.msra.mxu0 0.0
    %479 = vmatprep.subr.mxu0 0.0
    %480 = vmatpush1.msra.mxu0 0.0
    %481 = vmatprep.subr.mxu0 0.0
    %482 = vmatpush1.msra.mxu0 0.0
    %483 = vmatprep.subr.mxu0 0.0
    %484 = vmatpush1.msra.mxu0 0.0
    %485 = vmatprep.subr.mxu0 0.0
    %486 = vmatpush1.msra.mxu0 0.0
    %487 = vmatprep.subr.mxu0 0.0
    %488 = vmatpush1.msra.mxu0 0.0
    %489 = vmatprep.subr.mxu0 0.0
    %490 = vmatpush1.msra.mxu0 0.0
    %491 = vmatprep.subr.mxu0 0.0
    %492 = vmatpush1.msra.mxu0 0.0
    %493 = vmatprep.mubr.f32.mxu0 0.0
    %494 = vmatmul.mubr.f32.gmra.mrb[0].mxu0 %v427
    %v495 = vpop.f32.mrb[0].mxu0
    %v496 = vadd.f32 %v174, %v495
    %v497 = vpop.f32.mrb[0].mxu0
    %498 = vdwg.mxu0
    %v500 = vrot.slane %v496, 4
    %v502 = vadd.f32 %v162, %v500
    %v503 = vxor.u32 %v502, 2147483648
    %v504 = vmul.f32 %v503, 1.442695
    %v505 = vpow.pop %v504
    %v506 = vadd.f32 %v505, 1.0
    %v507 = vrcp.pop %v506
    %v508 = vmul.f32 1.0, %v507
    %509 = vrot.lane.b32.xlu0 %v500, 64
    %v510 = vpop.permute.xlu0 %509
    %v512 = vmul.f32 %v508, %v510
    %514 = vrot.lane.b32.xlu0 %v512, 64
    %v515 = vpop.permute.xlu0 %514
    %v517 = vadd.f32 %v162, %v515
    %v518 = vtanh.pop %v517
    %v520 = vrot.slane %v518, 2
    %v522 = vsub.f32 %v412, %v520
    %v524 = vrot.slane %v522, 6
    %525 = vrot.lane.b32.xlu0 %v524, 96
    %v526 = vpop.permute.xlu0 %525
    %v528 = vmul.f32 %v508, %v526
    %530 = vrot.lane.b32.xlu0 %v528, 32
    %v531 = vpop.permute.xlu0 %530
    %v533 = vadd.f32 %v518, %v531
    %v534 = vmul.f32 %v533, %v285
    %536 = vrot.lane.b32.xlu0 %v534, 64
    %v537 = vpop.permute.xlu0 %536
    %vm539 = vcmask 259076
    %v540 = vsel %vm539, %v537, 0.0
    %541 = vadd.xlane.f32.xlu0 %v540
    %v542 = vpop.xlane.xlu0 %541
    %v543 = vadd.f32 %v542, %v300
    %v545 = vrot.slane %v533, 4
    %546 = vrot.lane.b32.xlu0 %v545, 64
    %v547 = vpop.permute.xlu0 %546
    %v548 = vsel %vm176, %v547, 0
    %550 = vmatprep.subr.mxu0 0.0
    %551 = vmatpush1.msra.mxu0 %v76
    %552 = vmatprep.subr.mxu0 0.0
    %553 = vmatpush1.msra.mxu0 %v77
    %554 = vmatprep.subr.mxu0 0.0
    %555 = vmatpush1.msra.mxu0 %v78
    %556 = vmatprep.subr.mxu0 0.0
    %557 = vmatpush1.msra.mxu0 %v79
    %558 = vmatprep.subr.mxu0 0.0
    %559 = vmatpush1.msra.mxu0 0.0
    %560 = vmatprep.subr.mxu0 0.0
    %561 = vmatpush1.msra.mxu0 0.0
    %562 = vmatprep.subr.mxu0 0.0
    %563 = vmatpush1.msra.mxu0 0.0
    %564 = vmatprep.subr.mxu0 0.0
    %565 = vmatpush1.msra.mxu0 0.0
    %566 = vmatprep.subr.mxu0 0.0
    %567 = vmatpush1.msra.mxu0 0.0
    %568 = vmatprep.subr.mxu0 0.0
    %569 = vmatpush1.msra.mxu0 0.0
    %570 = vmatprep.subr.mxu0 0.0
    %571 = vmatpush1.msra.mxu0 0.0
    %572 = vmatprep.subr.mxu0 0.0
    %573 = vmatpush1.msra.mxu0 0.0
    %574 = vmatprep.subr.mxu0 0.0
    %575 = vmatpush1.msra.mxu0 0.0
    %576 = vmatprep.subr.mxu0 0.0
    %577 = vmatpush1.msra.mxu0 0.0
    %578 = vmatprep.subr.mxu0 0.0
    %579 = vmatpush1.msra.mxu0 0.0
    %580 = vmatprep.subr.mxu0 0.0
    %581 = vmatpush1.msra.mxu0 0.0
    %582 = vmatprep.subr.mxu0 0.0
    %583 = vmatpush1.msra.mxu0 0.0
    %584 = vmatprep.subr.mxu0 0.0
    %585 = vmatpush1.msra.mxu0 0.0
    %586 = vmatprep.subr.mxu0 0.0
    %587 = vmatpush1.msra.mxu0 0.0
    %588 = vmatprep.subr.mxu0 0.0
    %589 = vmatpush1.msra.mxu0 0.0
    %590 = vmatprep.subr.mxu0 0.0
    %591 = vmatpush1.msra.mxu0 0.0
    %592 = vmatprep.subr.mxu0 0.0
    %593 = vmatpush1.msra.mxu0 0.0
    %594 = vmatprep.subr.mxu0 0.0
    %595 = vmatpush1.msra.mxu0 0.0
    %596 = vmatprep.subr.mxu0 0.0
    %597 = vmatpush1.msra.mxu0 0.0
    %598 = vmatprep.subr.mxu0 0.0
    %599 = vmatpush1.msra.mxu0 0.0
    %600 = vmatprep.subr.mxu0 0.0
    %601 = vmatpush1.msra.mxu0 0.0
    %602 = vmatprep.subr.mxu0 0.0
    %603 = vmatpush1.msra.mxu0 0.0
    %604 = vmatprep.subr.mxu0 0.0
    %605 = vmatpush1.msra.mxu0 0.0
    %606 = vmatprep.subr.mxu0 0.0
    %607 = vmatpush1.msra.mxu0 0.0
    %608 = vmatprep.subr.mxu0 0.0
    %609 = vmatpush1.msra.mxu0 0.0
    %610 = vmatprep.subr.mxu0 0.0
    %611 = vmatpush1.msra.mxu0 0.0
    %612 = vmatprep.subr.mxu0 0.0
    %613 = vmatpush1.msra.mxu0 0.0
    %614 = vmatprep.mubr.f32.mxu0 0.0
    %615 = vmatmul.mubr.f32.gmra.mrb[0].mxu0 %v548
    %v616 = vpop.f32.mrb[0].mxu0
    %v617 = vadd.f32 %v174, %v616
    %v618 = vpop.f32.mrb[0].mxu0
    %619 = vdwg.mxu0
    %v621 = vrot.slane %v617, 2
    %v623 = vadd.f32 %v162, %v621
    %v624 = vxor.u32 %v623, 2147483648
    %v625 = vmul.f32 %v624, 1.442695
    %v626 = vpow.pop %v625
    %v627 = vadd.f32 %v626, 1.0
    %v628 = vrcp.pop %v627
    %v629 = vmul.f32 1.0, %v628
    %630 = vrot.lane.b32.xlu0 %v621, 64
    %v631 = vpop.permute.xlu0 %630
    %v633 = vmul.f32 %v629, %v631
    %635 = vrot.lane.b32.xlu0 %v633, 64
    %v636 = vpop.permute.xlu0 %635
    %v638 = vadd.f32 %v162, %v636
    %v639 = vtanh.pop %v638
    %v641 = vrot.slane %v639, 2
    %v643 = vsub.f32 %v533, %v641
    %v645 = vrot.slane %v643, 6
    %646 = vrot.lane.b32.xlu0 %v645, 96
    %v647 = vpop.permute.xlu0 %646
    %v649 = vmul.f32 %v629, %v647
    %651 = vrot.lane.b32.xlu0 %v649, 32
    %v652 = vpop.permute.xlu0 %651
    %v654 = vadd.f32 %v639, %v652
    %v655 = vmul.f32 %v654, %v285
    %657 = vrot.lane.b32.xlu0 %v655, 64
    %v658 = vpop.permute.xlu0 %657
    %vm660 = vcmask 261126
    %v661 = vsel %vm660, %v658, 0.0
    %662 = vadd.xlane.f32.xlu0 %v661
    %v663 = vpop.xlane.xlu0 %662
    %v664 = vadd.f32 %v663, %v300
    %v666 = vrot.slane %v654, 6
    %667 = vrot.lane.b32.xlu0 %v666, 64
    %v668 = vpop.permute.xlu0 %667
    %v669 = vsel %vm176, %v668, 0
    %671 = vmatprep.subr.mxu0 0.0
    %672 = vmatpush1.msra.mxu0 %v76
    %673 = vmatprep.subr.mxu0 0.0
    %674 = vmatpush1.msra.mxu0 %v77
    %675 = vmatprep.subr.mxu0 0.0
    %676 = vmatpush1.msra.mxu0 %v78
    %677 = vmatprep.subr.mxu0 0.0
    %678 = vmatpush1.msra.mxu0 %v79
    %679 = vmatprep.subr.mxu0 0.0
    %680 = vmatpush1.msra.mxu0 0.0
    %681 = vmatprep.subr.mxu0 0.0
    %682 = vmatpush1.msra.mxu0 0.0
    %683 = vmatprep.subr.mxu0 0.0
    %684 = vmatpush1.msra.mxu0 0.0
    %685 = vmatprep.subr.mxu0 0.0
    %686 = vmatpush1.msra.mxu0 0.0
    %687 = vmatprep.subr.mxu0 0.0
    %688 = vmatpush1.msra.mxu0 0.0
    %689 = vmatprep.subr.mxu0 0.0
    %690 = vmatpush1.msra.mxu0 0.0
    %691 = vmatprep.subr.mxu0 0.0
    %692 = vmatpush1.msra.mxu0 0.0
    %693 = vmatprep.subr.mxu0 0.0
    %694 = vmatpush1.msra.mxu0 0.0
    %695 = vmatprep.subr.mxu0 0.0
    %696 = vmatpush1.msra.mxu0 0.0
    %697 = vmatprep.subr.mxu0 0.0
    %698 = vmatpush1.msra.mxu0 0.0
    %699 = vmatprep.subr.mxu0 0.0
    %700 = vmatpush1.msra.mxu0 0.0
    %701 = vmatprep.subr.mxu0 0.0
    %702 = vmatpush1.msra.mxu0 0.0
    %703 = vmatprep.subr.mxu0 0.0
    %704 = vmatpush1.msra.mxu0 0.0
    %705 = vmatprep.subr.mxu0 0.0
    %706 = vmatpush1.msra.mxu0 0.0
    %707 = vmatprep.subr.mxu0 0.0
    %708 = vmatpush1.msra.mxu0 0.0
    %709 = vmatprep.subr.mxu0 0.0
    %710 = vmatpush1.msra.mxu0 0.0
    %711 = vmatprep.subr.mxu0 0.0
    %712 = vmatpush1.msra.mxu0 0.0
    %713 = vmatprep.subr.mxu0 0.0
    %714 = vmatpush1.msra.mxu0 0.0
    %715 = vmatprep.subr.mxu0 0.0
    %716 = vmatpush1.msra.mxu0 0.0
    %717 = vmatprep.subr.mxu0 0.0
    %718 = vmatpush1.msra.mxu0 0.0
    %719 = vmatprep.subr.mxu0 0.0
    %720 = vmatpush1.msra.mxu0 0.0
    %721 = vmatprep.subr.mxu0 0.0
    %722 = vmatpush1.msra.mxu0 0.0
    %723 = vmatprep.subr.mxu0 0.0
    %724 = vmatpush1.msra.mxu0 0.0
    %725 = vmatprep.subr.mxu0 0.0
    %726 = vmatpush1.msra.mxu0 0.0
    %727 = vmatprep.subr.mxu0 0.0
    %728 = vmatpush1.msra.mxu0 0.0
    %729 = vmatprep.subr.mxu0 0.0
    %730 = vmatpush1.msra.mxu0 0.0
    %731 = vmatprep.subr.mxu0 0.0
    %732 = vmatpush1.msra.mxu0 0.0
    %733 = vmatprep.subr.mxu0 0.0
    %734 = vmatpush1.msra.mxu0 0.0
    %735 = vmatprep.mubr.f32.mxu0 0.0
    %736 = vmatmul.mubr.f32.gmra.mrb[0].mxu0 %v669
    %v737 = vpop.f32.mrb[0].mxu0
    %v738 = vadd.f32 %v174, %v737
    %v739 = vpop.f32.mrb[0].mxu0
    %740 = vdwg.mxu0
    %v741 = vadd.f32 %v167, %v738
    %v742 = vxor.u32 %v741, 2147483648
    %v743 = vmul.f32 %v742, 1.442695
    %v744 = vpow.pop %v743
    %v745 = vadd.f32 %v744, 1.0
    %v746 = vrcp.pop %v745
    %v747 = vmul.f32 1.0, %v746
    %749 = vrot.lane.b32.xlu0 %v738, 64
    %v750 = vpop.permute.xlu0 %749
    %v752 = vmul.f32 %v747, %v750
    %754 = vrot.lane.b32.xlu0 %v752, 64
    %v755 = vpop.permute.xlu0 %754
    %v757 = vadd.f32 %v167, %v755
    %v758 = vtanh.pop %v757
    %v760 = vrot.slane %v758, 2
    %v762 = vsub.f32 %v654, %v760
    %v764 = vrot.slane %v762, 6
    %765 = vrot.lane.b32.xlu0 %v764, 96
    %v766 = vpop.permute.xlu0 %765
    %v768 = vmul.f32 %v747, %v766
    %770 = vrot.lane.b32.xlu0 %v768, 32
    %v771 = vpop.permute.xlu0 %770
    %v773 = vadd.f32 %v758, %v771
    %v774 = vmul.f32 %v773, %v285
    %776 = vrot.lane.b32.xlu0 %v774, 64
    %v777 = vpop.permute.xlu0 %776
    %v779 = vsel %vm292, %v777, 0.0
    %780 = vadd.xlane.f32.xlu0 %v779
    %v781 = vpop.xlane.xlu0 %780
    %v782 = vadd.f32 %v781, %v300
    %784 = vrot.lane.b32.xlu0 %v773, 64
    %v785 = vpop.permute.xlu0 %784
    %v786 = vsel %vm176, %v785, 0
    %788 = vmatprep.subr.mxu0 0.0
    %789 = vmatpush1.msra.mxu0 %v76
    %790 = vmatprep.subr.mxu0 0.0
    %791 = vmatpush1.msra.mxu0 %v77
    %792 = vmatprep.subr.mxu0 0.0
    %793 = vmatpush1.msra.mxu0 %v78
    %794 = vmatprep.subr.mxu0 0.0
    %795 = vmatpush1.msra.mxu0 %v79
    %796 = vmatprep.subr.mxu0 0.0
    %797 = vmatpush1.msra.mxu0 0.0
    %798 = vmatprep.subr.mxu0 0.0
    %799 = vmatpush1.msra.mxu0 0.0
    %800 = vmatprep.subr.mxu0 0.0
    %801 = vmatpush1.msra.mxu0 0.0
    %802 = vmatprep.subr.mxu0 0.0
    %803 = vmatpush1.msra.mxu0 0.0
    %804 = vmatprep.subr.mxu0 0.0
    %805 = vmatpush1.msra.mxu0 0.0
    %806 = vmatprep.subr.mxu0 0.0
    %807 = vmatpush1.msra.mxu0 0.0
    %808 = vmatprep.subr.mxu0 0.0
    %809 = vmatpush1.msra.mxu0 0.0
    %810 = vmatprep.subr.mxu0 0.0
    %811 = vmatpush1.msra.mxu0 0.0
    %812 = vmatprep.subr.mxu0 0.0
    %813 = vmatpush1.msra.mxu0 0.0
    %814 = vmatprep.subr.mxu0 0.0
    %815 = vmatpush1.msra.mxu0 0.0
    %816 = vmatprep.subr.mxu0 0.0
    %817 = vmatpush1.msra.mxu0 0.0
    %818 = vmatprep.subr.mxu0 0.0
    %819 = vmatpush1.msra.mxu0 0.0
    %820 = vmatprep.subr.mxu0 0.0
    %821 = vmatpush1.msra.mxu0 0.0
    %822 = vmatprep.subr.mxu0 0.0
    %823 = vmatpush1.msra.mxu0 0.0
    %824 = vmatprep.subr.mxu0 0.0
    %825 = vmatpush1.msra.mxu0 0.0
    %826 = vmatprep.subr.mxu0 0.0
    %827 = vmatpush1.msra.mxu0 0.0
    %828 = vmatprep.subr.mxu0 0.0
    %829 = vmatpush1.msra.mxu0 0.0
    %830 = vmatprep.subr.mxu0 0.0
    %831 = vmatpush1.msra.mxu0 0.0
    %832 = vmatprep.subr.mxu0 0.0
    %833 = vmatpush1.msra.mxu0 0.0
    %834 = vmatprep.subr.mxu0 0.0
    %835 = vmatpush1.msra.mxu0 0.0
    %836 = vmatprep.subr.mxu0 0.0
    %837 = vmatpush1.msra.mxu0 0.0
    %838 = vmatprep.subr.mxu0 0.0
    %839 = vmatpush1.msra.mxu0 0.0
    %840 = vmatprep.subr.mxu0 0.0
    %841 = vmatpush1.msra.mxu0 0.0
    %842 = vmatprep.subr.mxu0 0.0
    %843 = vmatpush1.msra.mxu0 0.0
    %844 = vmatprep.subr.mxu0 0.0
    %845 = vmatpush1.msra.mxu0 0.0
    %846 = vmatprep.subr.mxu0 0.0
    %847 = vmatpush1.msra.mxu0 0.0
    %848 = vmatprep.subr.mxu0 0.0
    %849 = vmatpush1.msra.mxu0 0.0
    %850 = vmatprep.subr.mxu0 0.0
    %851 = vmatpush1.msra.mxu0 0.0
    %852 = vmatprep.mubr.f32.mxu0 0.0
    %853 = vmatmul.mubr.f32.gmra.mrb[0].mxu0 %v786
    %v854 = vpop.f32.mrb[0].mxu0
    %v855 = vadd.f32 %v174, %v854
    %v856 = vpop.f32.mrb[0].mxu0
    %857 = vdwg.mxu0
    %v859 = vrot.slane %v855, 6
    %v861 = vadd.f32 %v167, %v859
    %v862 = vxor.u32 %v861, 2147483648
    %v863 = vmul.f32 %v862, 1.442695
    %v864 = vpow.pop %v863
    %v865 = vadd.f32 %v864, 1.0
    %v866 = vrcp.pop %v865
    %v867 = vmul.f32 1.0, %v866
    %868 = vrot.lane.b32.xlu0 %v859, 64
    %v869 = vpop.permute.xlu0 %868
    %v871 = vmul.f32 %v867, %v869
    %873 = vrot.lane.b32.xlu0 %v871, 64
    %v874 = vpop.permute.xlu0 %873
    %v876 = vadd.f32 %v167, %v874
    %v877 = vtanh.pop %v876
    %v879 = vrot.slane %v877, 2
    %v881 = vsub.f32 %v773, %v879
    %v883 = vrot.slane %v881, 6
    %884 = vrot.lane.b32.xlu0 %v883, 96
    %v885 = vpop.permute.xlu0 %884
    %v887 = vmul.f32 %v867, %v885
    %889 = vrot.lane.b32.xlu0 %v887, 32
    %v890 = vpop.permute.xlu0 %889
    %v892 = vadd.f32 %v877, %v890
    %v893 = vmul.f32 %v892, %v285
    %895 = vrot.lane.b32.xlu0 %v893, 64
    %v896 = vpop.permute.xlu0 %895
    %v898 = vsel %vm418, %v896, 0.0
    %899 = vadd.xlane.f32.xlu0 %v898
    %v900 = vpop.xlane.xlu0 %899
    %v901 = vadd.f32 %v900, %v300
    %v903 = vrot.slane %v892, 2
    %904 = vrot.lane.b32.xlu0 %v903, 64
    %v905 = vpop.permute.xlu0 %904
    %v906 = vsel %vm176, %v905, 0
    %908 = vmatprep.subr.mxu0 0.0
    %909 = vmatpush1.msra.mxu0 %v76
    %910 = vmatprep.subr.mxu0 0.0
    %911 = vmatpush1.msra.mxu0 %v77
    %912 = vmatprep.subr.mxu0 0.0
    %913 = vmatpush1.msra.mxu0 %v78
    %914 = vmatprep.subr.mxu0 0.0
    %915 = vmatpush1.msra.mxu0 %v79
    %916 = vmatprep.subr.mxu0 0.0
    %917 = vmatpush1.msra.mxu0 0.0
    %918 = vmatprep.subr.mxu0 0.0
    %919 = vmatpush1.msra.mxu0 0.0
    %920 = vmatprep.subr.mxu0 0.0
    %921 = vmatpush1.msra.mxu0 0.0
    %922 = vmatprep.subr.mxu0 0.0
    %923 = vmatpush1.msra.mxu0 0.0
    %924 = vmatprep.subr.mxu0 0.0
    %925 = vmatpush1.msra.mxu0 0.0
    %926 = vmatprep.subr.mxu0 0.0
    %927 = vmatpush1.msra.mxu0 0.0
    %928 = vmatprep.subr.mxu0 0.0
    %929 = vmatpush1.msra.mxu0 0.0
    %930 = vmatprep.subr.mxu0 0.0
    %931 = vmatpush1.msra.mxu0 0.0
    %932 = vmatprep.subr.mxu0 0.0
    %933 = vmatpush1.msra.mxu0 0.0
    %934 = vmatprep.subr.mxu0 0.0
    %935 = vmatpush1.msra.mxu0 0.0
    %936 = vmatprep.subr.mxu0 0.0
    %937 = vmatpush1.msra.mxu0 0.0
    %938 = vmatprep.subr.mxu0 0.0
    %939 = vmatpush1.msra.mxu0 0.0
    %940 = vmatprep.subr.mxu0 0.0
    %941 = vmatpush1.msra.mxu0 0.0
    %942 = vmatprep.subr.mxu0 0.0
    %943 = vmatpush1.msra.mxu0 0.0
    %944 = vmatprep.subr.mxu0 0.0
    %945 = vmatpush1.msra.mxu0 0.0
    %946 = vmatprep.subr.mxu0 0.0
    %947 = vmatpush1.msra.mxu0 0.0
    %948 = vmatprep.subr.mxu0 0.0
    %949 = vmatpush1.msra.mxu0 0.0
    %950 = vmatprep.subr.mxu0 0.0
    %951 = vmatpush1.msra.mxu0 0.0
    %952 = vmatprep.subr.mxu0 0.0
    %953 = vmatpush1.msra.mxu0 0.0
    %954 = vmatprep.subr.mxu0 0.0
    %955 = vmatpush1.msra.mxu0 0.0
    %956 = vmatprep.subr.mxu0 0.0
    %957 = vmatpush1.msra.mxu0 0.0
    %958 = vmatprep.subr.mxu0 0.0
    %959 = vmatpush1.msra.mxu0 0.0
    %960 = vmatprep.subr.mxu0 0.0
    %961 = vmatpush1.msra.mxu0 0.0
    %962 = vmatprep.subr.mxu0 0.0
    %963 = vmatpush1.msra.mxu0 0.0
    %964 = vmatprep.subr.mxu0 0.0
    %965 = vmatpush1.msra.mxu0 0.0
    %966 = vmatprep.subr.mxu0 0.0
    %967 = vmatpush1.msra.mxu0 0.0
    %968 = vmatprep.subr.mxu0 0.0
    %969 = vmatpush1.msra.mxu0 0.0
    %970 = vmatprep.subr.mxu0 0.0
    %971 = vmatpush1.msra.mxu0 0.0
    %972 = vmatprep.mubr.f32.mxu0 0.0
    %973 = vmatmul.mubr.f32.gmra.mrb[0].mxu0 %v906
    %v974 = vpop.f32.mrb[0].mxu0
    %v975 = vadd.f32 %v174, %v974
    %v976 = vpop.f32.mrb[0].mxu0
    %977 = vdwg.mxu0
    %v979 = vrot.slane %v975, 4
    %v981 = vadd.f32 %v167, %v979
    %v982 = vxor.u32 %v981, 2147483648
    %v983 = vmul.f32 %v982, 1.442695
    %v984 = vpow.pop %v983
    %v985 = vadd.f32 %v984, 1.0
    %v986 = vrcp.pop %v985
    %v987 = vmul.f32 1.0, %v986
    %988 = vrot.lane.b32.xlu0 %v979, 64
    %v989 = vpop.permute.xlu0 %988
    %v991 = vmul.f32 %v987, %v989
    %993 = vrot.lane.b32.xlu0 %v991, 64
    %v994 = vpop.permute.xlu0 %993
    %v996 = vadd.f32 %v167, %v994
    %v997 = vtanh.pop %v996
    %v999 = vrot.slane %v997, 2
    %v1001 = vsub.f32 %v892, %v999
    %v1003 = vrot.slane %v1001, 6
    %1004 = vrot.lane.b32.xlu0 %v1003, 96
    %v1005 = vpop.permute.xlu0 %1004
    %v1007 = vmul.f32 %v987, %v1005
    %1009 = vrot.lane.b32.xlu0 %v1007, 32
    %v1010 = vpop.permute.xlu0 %1009
    %v1012 = vadd.f32 %v997, %v1010
    %v1013 = vmul.f32 %v1012, %v285
    %1015 = vrot.lane.b32.xlu0 %v1013, 64
    %v1016 = vpop.permute.xlu0 %1015
    %v1018 = vsel %vm539, %v1016, 0.0
    %1019 = vadd.xlane.f32.xlu0 %v1018
    %v1020 = vpop.xlane.xlu0 %1019
    %v1021 = vadd.f32 %v1020, %v300
    %v1023 = vrot.slane %v1012, 4
    %1024 = vrot.lane.b32.xlu0 %v1023, 64
    %v1025 = vpop.permute.xlu0 %1024
    %v1026 = vsel %vm176, %v1025, 0
    %1028 = vmatprep.subr.mxu0 0.0
    %1029 = vmatpush1.msra.mxu0 %v76
    %1030 = vmatprep.subr.mxu0 0.0
    %1031 = vmatpush1.msra.mxu0 %v77
    %1032 = vmatprep.subr.mxu0 0.0
    %1033 = vmatpush1.msra.mxu0 %v78
    %1034 = vmatprep.subr.mxu0 0.0
    %1035 = vmatpush1.msra.mxu0 %v79
    %1036 = vmatprep.subr.mxu0 0.0
    %1037 = vmatpush1.msra.mxu0 0.0
    %1038 = vmatprep.subr.mxu0 0.0
    %1039 = vmatpush1.msra.mxu0 0.0
    %1040 = vmatprep.subr.mxu0 0.0
    %1041 = vmatpush1.msra.mxu0 0.0
    %1042 = vmatprep.subr.mxu0 0.0
    %1043 = vmatpush1.msra.mxu0 0.0
    %1044 = vmatprep.subr.mxu0 0.0
    %1045 = vmatpush1.msra.mxu0 0.0
    %1046 = vmatprep.subr.mxu0 0.0
    %1047 = vmatpush1.msra.mxu0 0.0
    %1048 = vmatprep.subr.mxu0 0.0
    %1049 = vmatpush1.msra.mxu0 0.0
    %1050 = vmatprep.subr.mxu0 0.0
    %1051 = vmatpush1.msra.mxu0 0.0
    %1052 = vmatprep.subr.mxu0 0.0
    %1053 = vmatpush1.msra.mxu0 0.0
    %1054 = vmatprep.subr.mxu0 0.0
    %1055 = vmatpush1.msra.mxu0 0.0
    %1056 = vmatprep.subr.mxu0 0.0
    %1057 = vmatpush1.msra.mxu0 0.0
    %1058 = vmatprep.subr.mxu0 0.0
    %1059 = vmatpush1.msra.mxu0 0.0
    %1060 = vmatprep.subr.mxu0 0.0
    %1061 = vmatpush1.msra.mxu0 0.0
    %1062 = vmatprep.subr.mxu0 0.0
    %1063 = vmatpush1.msra.mxu0 0.0
    %1064 = vmatprep.subr.mxu0 0.0
    %1065 = vmatpush1.msra.mxu0 0.0
    %1066 = vmatprep.subr.mxu0 0.0
    %1067 = vmatpush1.msra.mxu0 0.0
    %1068 = vmatprep.subr.mxu0 0.0
    %1069 = vmatpush1.msra.mxu0 0.0
    %1070 = vmatprep.subr.mxu0 0.0
    %1071 = vmatpush1.msra.mxu0 0.0
    %1072 = vmatprep.subr.mxu0 0.0
    %1073 = vmatpush1.msra.mxu0 0.0
    %1074 = vmatprep.subr.mxu0 0.0
    %1075 = vmatpush1.msra.mxu0 0.0
    %1076 = vmatprep.subr.mxu0 0.0
    %1077 = vmatpush1.msra.mxu0 0.0
    %1078 = vmatprep.subr.mxu0 0.0
    %1079 = vmatpush1.msra.mxu0 0.0
    %1080 = vmatprep.subr.mxu0 0.0
    %1081 = vmatpush1.msra.mxu0 0.0
    %1082 = vmatprep.subr.mxu0 0.0
    %1083 = vmatpush1.msra.mxu0 0.0
    %1084 = vmatprep.subr.mxu0 0.0
    %1085 = vmatpush1.msra.mxu0 0.0
    %1086 = vmatprep.subr.mxu0 0.0
    %1087 = vmatpush1.msra.mxu0 0.0
    %1088 = vmatprep.subr.mxu0 0.0
    %1089 = vmatpush1.msra.mxu0 0.0
    %1090 = vmatprep.subr.mxu0 0.0
    %1091 = vmatpush1.msra.mxu0 0.0
    %1092 = vmatprep.mubr.f32.mxu0 0.0
    %1093 = vmatmul.mubr.f32.gmra.mrb[0].mxu0 %v1026
    %v1094 = vpop.f32.mrb[0].mxu0
    %v1095 = vadd.f32 %v174, %v1094
    %v1096 = vpop.f32.mrb[0].mxu0
    %1097 = vdwg.mxu0
    %v1099 = vrot.slane %v1095, 2
    %v1101 = vadd.f32 %v167, %v1099
    %v1102 = vxor.u32 %v1101, 2147483648
    %v1103 = vmul.f32 %v1102, 1.442695
    %v1104 = vpow.pop %v1103
    %v1105 = vadd.f32 %v1104, 1.0
    %v1106 = vrcp.pop %v1105
    %v1107 = vmul.f32 1.0, %v1106
    %1108 = vrot.lane.b32.xlu0 %v1099, 64
    %v1109 = vpop.permute.xlu0 %1108
    %v1111 = vmul.f32 %v1107, %v1109
    %1113 = vrot.lane.b32.xlu0 %v1111, 64
    %v1114 = vpop.permute.xlu0 %1113
    %v1116 = vadd.f32 %v167, %v1114
    %v1117 = vtanh.pop %v1116
    %v1119 = vrot.slane %v1117, 2
    %v1121 = vsub.f32 %v1012, %v1119
    %v1123 = vrot.slane %v1121, 6
    %1124 = vrot.lane.b32.xlu0 %v1123, 96
    %v1125 = vpop.permute.xlu0 %1124
    %v1127 = vmul.f32 %v1107, %v1125
    %1129 = vrot.lane.b32.xlu0 %v1127, 32
    %v1130 = vpop.permute.xlu0 %1129
    %v1132 = vadd.f32 %v1117, %v1130
    %v1133 = vmul.f32 %v1132, %v285
    %1135 = vrot.lane.b32.xlu0 %v1133, 64
    %v1136 = vpop.permute.xlu0 %1135
    %v1138 = vsel %vm660, %v1136, 0.0
    %1139 = vadd.xlane.f32.xlu0 %v1138
    %v1140 = vpop.xlane.xlu0 %1139
    %v1141 = vadd.f32 %v1140, %v300
    %v1143 = vrot.slane %v422, 2
    %1144 = vrot.lane.b32.xlu0 %v1143, 1
    %v1145 = vpop.permute.xlu0 %1144
    %v1148 = vrot.slane %v543, 4
    %1149 = vrot.lane.b32.xlu0 %v1148, 2
    %v1150 = vpop.permute.xlu0 %1149
    %v1153 = vrot.slane %v664, 6
    %1154 = vrot.lane.b32.xlu0 %v1153, 3
    %v1155 = vpop.permute.xlu0 %1154
    %1158 = vrot.lane.b32.xlu0 %v782, 4
    %v1159 = vpop.permute.xlu0 %1158
    %v1162 = vrot.slane %v901, 2
    %1163 = vrot.lane.b32.xlu0 %v1162, 5
    %v1164 = vpop.permute.xlu0 %1163
    %v1167 = vrot.slane %v1021, 4
    %1168 = vrot.lane.b32.xlu0 %v1167, 6
    %v1169 = vpop.permute.xlu0 %1168
    %v1172 = vrot.slane %v1141, 6
    %1173 = vrot.lane.b32.xlu0 %v1172, 7
    %v1174 = vpop.permute.xlu0 %1173
    %vm1176 = vcmask 7168
    %v1177 = vsel %vm1176, %v302, %v1145
    %vm1178 = vcmask 15360
    %v1179 = vsel %vm1178, %v1177, %v1150
    %vm1180 = vcmask 23552
    %v1181 = vsel %vm1180, %v1179, %v1155
    %vm1182 = vcmask 31744
    %v1183 = vsel %vm1182, %v1181, %v1159
    %vm1184 = vcmask 39936
    %v1185 = vsel %vm1184, %v1183, %v1164
    %vm1186 = vcmask 48128
    %v1187 = vsel %vm1186, %v1185, %v1169
    %vm1188 = vcmask 56320
    %v1189 = vsel %vm1188, %v1187, %v1174
    %v1190 = vmax.f32 %v1189, 0.0
    %vm1191 = vcmask 58368
    %1192 = vst.msk [vmem:[#allocation9] sm:$0x3] %vm1191, %v1190
    // Predicated region
    $region42: #{tpu_custom_call.1} parent=1 // pred_check
      _
    $region43: #{tpu_custom_call.1} parent=1 // pred_check_branch
      %1194 = sbr.rel (0) target = $region45
    $region44: #{tpu_custom_call.1} parent=1 // pred_region
      %s1196 = ssub.s32 32, 32
      %1197 = vsyncadd [#allocation5], %s1196
      %s1199 = sshll.u32 [#allocation9], 4
      %s1200 = int_to_ptr.vmem [resolvable:$true] %s1199
      %1202 = dma.vmem_to_hbm [thread:$0]  %s1200, 32, %s7, [#allocation5]
    $region45: #{tpu_custom_call.1} parent=1 // pred_fallthru
      _
    // Predicated region
    $region46: #{tpu_custom_call.1} parent=1 // pred_check
      _
    $region47: #{tpu_custom_call.1} parent=1 // pred_check_branch
      %1204 = sbr.rel (0) target = $region49
    $region48: #{tpu_custom_call.1} parent=1 // pred_region
      %1205 = dma.done [#allocation5], 32
    $region49: #{tpu_custom_call.1} parent=1 // pred_fallthru
      _
    %1206 = vsyncpa [#allocation4], 1
    %1207 = vsyncpa [#allocation7], 1
    %1208 = vsyncpa [#allocation5], 1

</llo_original>
